<compile_context>
chip_gen: v7x
topology: tpu7x:2x2x1
jax: 0.10.0
libtpu: 0.0.40
codegen_flags: <defaults>
</compile_context>

<pallas_src>
import jax
import jax.numpy as jnp
from jax.experimental import pallas as pl
from jax.experimental.pallas import tpu as pltpu

EPS = 1e-5


def _build_kernel(Cp, H, W, S):
    Hp = H + 2
    HpS = Hp * S                  # columns of the stacked scratch
    L = H * S                     # output slab lanes (incl. junk columns)
    inv_cnt = 1.0 / float(H * W)  # stats over the H*W valid pixels only

    def kernel(x_ref, w_ref, o_ref, xs_ref):
        # x_ref:  (Cp, Lpad)     bf16 flattened reflection-padded input (row stride S)
        # w_ref:  (3, Cp, 3*Cp)  bf16 per-kh stacked weights, [kh, c_out, kw*Cp + c_in]
        # o_ref:  (Cp, L)        f32 output slab (junk columns dropped by wrapper)
        # xs_ref: (3*Cp, HpS)    bf16 scratch: kw-shifted, channel-stacked input

        # Hoist the three kw shifts once (kw=0 is an aligned copy; kw=1,2 are the
        # only cross-lane shifted copies in the whole kernel).
        xs_ref[0 * Cp:1 * Cp, :] = x_ref[:, 0:HpS]
        xs_ref[1 * Cp:2 * Cp, :] = x_ref[:, 1:1 + HpS]
        xs_ref[2 * Cp:3 * Cp, :] = x_ref[:, 2:2 + HpS]

        # 3x3 conv = 3 bf16 matmuls with contraction dim 3*Cp (kw folded into K);
        # every slice start (kh*S) is a multiple of 128 lanes.  f32 accumulation.
        # No bias add: InstanceNorm(affine=False) cancels it exactly.
        acc = jnp.dot(w_ref[0], xs_ref[:, 0:L],
                      preferred_element_type=jnp.float32)
        acc = acc + jnp.dot(w_ref[1], xs_ref[:, S:S + L],
                            preferred_element_type=jnp.float32)
        acc = acc + jnp.dot(w_ref[2], xs_ref[:, 2 * S:2 * S + L],
                            preferred_element_type=jnp.float32)

        # In-kernel validity mask: column-within-row (S is a power of two) < W.
        lane = jax.lax.broadcasted_iota(jnp.int32, (1, L), 1)
        mask = ((lane & (S - 1)) < W).astype(jnp.float32)          # (1, L)

        # Fused InstanceNorm statistics (single sweep, f32, junk columns masked).
        ym = acc * mask
        s1 = jnp.sum(ym, axis=1, keepdims=True)                    # (Cp, 1)
        s2 = jnp.sum(ym * ym, axis=1, keepdims=True)               # (Cp, 1) = sum(mask*acc^2)
        mean = s1 * inv_cnt
        var = jnp.maximum(s2 * inv_cnt - mean * mean, 0.0)         # biased variance

        y = (acc - mean) * jax.lax.rsqrt(var + EPS)
        y = jnp.maximum(y, 0.0)                                    # ReLU

        # TODO(synk): Dropout(0.5) modeled as identity (eval-mode semantics).

        # Residual = original x = the (kh=1, kw=1) window: an aligned slice of
        # the scratch already in VMEM (CSE'd with the conv operand).
        res = xs_ref[Cp:2 * Cp, S:S + L].astype(jnp.float32)
        o_ref[...] = (y + res).astype(o_ref.dtype)

    return kernel


def resblock_forward(x, weight, bias=None):
    """x: (N, C, H, W) f32; weight: (C, C, 3, 3); bias accepted but mathematically
    cancelled by InstanceNorm2d(affine=False), so it is not used.  Eval-mode only
    (Dropout = identity, norm affine=False)."""
    del bias
    N, C, H, W = x.shape
    Hp, Wp = H + 2, W + 2
    S = max(128, pl.next_power_of_2(Wp))   # power-of-two lane-aligned row stride
    Cp = ((C + 15) // 16) * 16             # channel pad for bf16 sublane packing
    HpS = Hp * S
    L = H * S
    Lpad = HpS + 128                        # spare zeros so the kw=2 shift is in-bounds

    # Reflection pad, then zero-pad channels->Cp and row->S, flatten row-major.
    xpad = jnp.pad(x, ((0, 0), (0, 0), (1, 1), (1, 1)), mode="reflect")
    xpad = jnp.pad(xpad, ((0, 0), (0, Cp - C), (0, 0), (0, S - Wp)))
    xflat = xpad.reshape(N, Cp, HpS)
    xflat = jnp.pad(xflat, ((0, 0), (0, 0), (0, Lpad - HpS))).astype(jnp.bfloat16)

    # Stacked weights: wstack[kh, c_out, kw*Cp + c_in] = weight[c_out, c_in, kh, kw]
    wp = jnp.pad(weight, ((0, Cp - C), (0, Cp - C), (0, 0), (0, 0)))
    wstack = wp.transpose(2, 0, 3, 1).reshape(3, Cp, 3 * Cp).astype(jnp.bfloat16)

    kernel = _build_kernel(Cp, H, W, S)

    out = pl.pallas_call(
        kernel,
        out_shape=jax.ShapeDtypeStruct((N, Cp, L), x.dtype),
        grid_spec=pltpu.PrefetchScalarGridSpec(
            num_scalar_prefetch=0,
            grid=(N,),
            in_specs=[
                pl.BlockSpec((None, Cp, Lpad), lambda n: (n, 0, 0)),   # padded input (bf16)
                pl.BlockSpec((3, Cp, 3 * Cp), lambda n: (0, 0, 0)),    # stacked weights (bf16)
            ],
            out_specs=pl.BlockSpec((None, Cp, L), lambda n: (n, 0, 0)),
            scratch_shapes=[pltpu.VMEM((3 * Cp, HpS), jnp.bfloat16)],  # kw-stacked input
        ),
        compiler_params=pltpu.CompilerParams(
            dimension_semantics=("parallel",),
            # bf16 blocks + single scratch fit comfortably on all generations at
            # DeblurGAN sizes; see the spatial-tiling TODO for larger H*W on v7x.
            vmem_limit_bytes=64 * 1024 * 1024,
        ),
    )(xflat, wstack)

    # Drop padded channels and junk columns; restore (N, C, H, W). No transposes.
    return out.reshape(N, Cp, H, S)[:, :C, :, :W]


def resblock_reference(x, weight, bias):
    """Pure-JAX/XLA reference (eval-mode) for correctness checking."""
    xpad = jnp.pad(x, ((0, 0), (0, 0), (1, 1), (1, 1)), mode="reflect")
    y = jax.lax.conv_general_dilated(
        xpad, weight, window_strides=(1, 1), padding="VALID",
        dimension_numbers=("NCHW", "OIHW", "NCHW"))
    y = y + bias.reshape(1, -1, 1, 1)
    mean = jnp.mean(y, axis=(2, 3), keepdims=True)
    var = jnp.mean(jnp.square(y - mean), axis=(2, 3), keepdims=True)
    y = (y - mean) * jax.lax.rsqrt(var + EPS)
    y = jnp.maximum(y, 0.0)
    return y + x


if __name__ == "__main__":
    N, C, H, W = 2, 4, 16, 16

    key = jax.random.PRNGKey(0)
    kx, kw_, kb = jax.random.split(key, 3)

    x = jax.random.normal(kx, (N, C, H, W), dtype=jnp.float32)

    # Deterministic init mimicking PyTorch Conv2d default (U(+-1/sqrt(fan_in))).
    fan_in = C * 3 * 3
    bound = 1.0 / (fan_in ** 0.5)
    weight = jax.random.uniform(kw_, (C, C, 3, 3), jnp.float32, -bound, bound)
    bias = jax.random.uniform(kb, (C,), jnp.float32, -bound, bound)

    out = resblock_forward(x, weight, bias)
    jax.block_until_ready(out)

    assert out.shape == (N, C, H, W) and out.dtype == jnp.float32

    ref = resblock_reference(x, weight, bias)
    max_err = float(jnp.max(jnp.abs(out - ref)))
    assert max_err < 5e-2, f"mismatch vs reference: {max_err}"

    print("KERNEL_OK")
</pallas_src>

<mosaic_0001>
module attributes {stable_mosaic.version = 11 : i64} {
  func.func @kernel(%arg0: i32, %arg1: memref<1x16x2432xbf16, #tpu.memory_space<vmem>>, %arg2: memref<3x16x48xbf16, #tpu.memory_space<vmem>>, %arg3: memref<1x16x2048xf32, #tpu.memory_space<vmem>>, %arg4: memref<48x2304xbf16, #tpu.memory_space<vmem>>) attributes {dimension_semantics = [#tpu.dimension_semantics<parallel>], iteration_bounds = array<i64: 2>, scalar_prefetch = 0 : i64, scratch_operands = 1 : i64, tpu.core_type = #tpu.core_type<tc>, window_params = [{transform_indices = @transform_0, window_bounds = array<i64: 1, 16, 2432>}, {pipeline_mode = #tpu.pipeline_mode<synchronous>, transform_indices = @transform_1, window_bounds = array<i64: 3, 16, 48>}, {transform_indices = @transform_2, window_bounds = array<i64: 1, 16, 2048>}]} {
    %c0 = arith.constant 0 : index
    %c0_0 = arith.constant 0 : index
    %c0_1 = arith.constant 0 : index
    %0 = vector.load %arg1[%c0, %c0_0, %c0_1] : memref<1x16x2432xbf16, #tpu.memory_space<vmem>>, vector<1x16x2304xbf16>
    %1 = vector.shape_cast %0 : vector<1x16x2304xbf16> to vector<16x2304xbf16>
    %c0_2 = arith.constant 0 : index
    %c0_3 = arith.constant 0 : index
    %2 = vector.load %arg4[%c0_2, %c0_3] : memref<48x2304xbf16, #tpu.memory_space<vmem>>, vector<16x2304xbf16>
    tpu.vector_store %arg4[%c0_2, %c0_3], %1 {strides = array<i32>} : memref<48x2304xbf16, #tpu.memory_space<vmem>>, vector<16x2304xbf16>,
    %c0_4 = arith.constant 0 : index
    %c0_5 = arith.constant 0 : index
    %c1 = arith.constant 1 : index
    %3 = vector.load %arg1[%c0_4, %c0_5, %c1] : memref<1x16x2432xbf16, #tpu.memory_space<vmem>>, vector<1x16x2304xbf16>
    %4 = vector.shape_cast %3 : vector<1x16x2304xbf16> to vector<16x2304xbf16>
    %c16 = arith.constant 16 : index
    %c0_6 = arith.constant 0 : index
    %5 = vector.load %arg4[%c16, %c0_6] : memref<48x2304xbf16, #tpu.memory_space<vmem>>, vector<16x2304xbf16>
    tpu.vector_store %arg4[%c16, %c0_6], %4 {strides = array<i32>} : memref<48x2304xbf16, #tpu.memory_space<vmem>>, vector<16x2304xbf16>,
    %c0_7 = arith.constant 0 : index
    %c0_8 = arith.constant 0 : index
    %c2 = arith.constant 2 : index
    %6 = vector.load %arg1[%c0_7, %c0_8, %c2] : memref<1x16x2432xbf16, #tpu.memory_space<vmem>>, vector<1x16x2304xbf16>
    %7 = vector.shape_cast %6 : vector<1x16x2304xbf16> to vector<16x2304xbf16>
    %c32 = arith.constant 32 : index
    %c0_9 = arith.constant 0 : index
    %8 = vector.load %arg4[%c32, %c0_9] : memref<48x2304xbf16, #tpu.memory_space<vmem>>, vector<16x2304xbf16>
    tpu.vector_store %arg4[%c32, %c0_9], %7 {strides = array<i32>} : memref<48x2304xbf16, #tpu.memory_space<vmem>>, vector<16x2304xbf16>,
    %c0_10 = arith.constant 0 : index
    %c0_11 = arith.constant 0 : index
    %c0_12 = arith.constant 0 : index
    %9 = vector.load %arg2[%c0_10, %c0_11, %c0_12] : memref<3x16x48xbf16, #tpu.memory_space<vmem>>, vector<1x16x48xbf16>
    %10 = vector.shape_cast %9 : vector<1x16x48xbf16> to vector<16x48xbf16>
    %c0_13 = arith.constant 0 : index
    %c0_14 = arith.constant 0 : index
    %11 = vector.load %arg4[%c0_13, %c0_14] : memref<48x2304xbf16, #tpu.memory_space<vmem>>, vector<48x2048xbf16>
    %cst = arith.constant dense<0.000000e+00> : vector<16x2048xf32>
    %12 = tpu.matmul %10, %11, %cst {dimension_numbers = #tpu.dot_dimension_numbers<[1], [0], [0], [1], [0, 0, 1, 1], [], []>} : vector<16x48xbf16>, vector<48x2048xbf16>, vector<16x2048xf32> -> vector<16x2048xf32>
    %c1_15 = arith.constant 1 : index
    %c0_16 = arith.constant 0 : index
    %c0_17 = arith.constant 0 : index
    %13 = vector.load %arg2[%c1_15, %c0_16, %c0_17] : memref<3x16x48xbf16, #tpu.memory_space<vmem>>, vector<1x16x48xbf16>
    %14 = vector.shape_cast %13 : vector<1x16x48xbf16> to vector<16x48xbf16>
    %c0_18 = arith.constant 0 : index
    %c128 = arith.constant 128 : index
    %15 = vector.load %arg4[%c0_18, %c128] : memref<48x2304xbf16, #tpu.memory_space<vmem>>, vector<48x2048xbf16>
    %cst_19 = arith.constant dense<0.000000e+00> : vector<16x2048xf32>
    %16 = tpu.matmul %14, %15, %cst_19 {dimension_numbers = #tpu.dot_dimension_numbers<[1], [0], [0], [1], [0, 0, 1, 1], [], []>} : vector<16x48xbf16>, vector<48x2048xbf16>, vector<16x2048xf32> -> vector<16x2048xf32>
    %17 = arith.addf %12, %16 : vector<16x2048xf32>
    %c2_20 = arith.constant 2 : index
    %c0_21 = arith.constant 0 : index
    %c0_22 = arith.constant 0 : index
    %18 = vector.load %arg2[%c2_20, %c0_21, %c0_22] : memref<3x16x48xbf16, #tpu.memory_space<vmem>>, vector<1x16x48xbf16>
    %19 = vector.shape_cast %18 : vector<1x16x48xbf16> to vector<16x48xbf16>
    %c0_23 = arith.constant 0 : index
    %c256 = arith.constant 256 : index
    %20 = vector.load %arg4[%c0_23, %c256] : memref<48x2304xbf16, #tpu.memory_space<vmem>>, vector<48x2048xbf16>
    %cst_24 = arith.constant dense<0.000000e+00> : vector<16x2048xf32>
    %21 = tpu.matmul %19, %20, %cst_24 {dimension_numbers = #tpu.dot_dimension_numbers<[1], [0], [0], [1], [0, 0, 1, 1], [], []>} : vector<16x48xbf16>, vector<48x2048xbf16>, vector<16x2048xf32> -> vector<16x2048xf32>
    %22 = arith.addf %17, %21 : vector<16x2048xf32>
    %23 = tpu.iota {dimensions = array<i32: 1>} : vector<1x2048xi32>
    %c127_i32 = arith.constant 127 : i32
    %24 = vector.broadcast %c127_i32 : i32 to vector<1x2048xi32>
    %25 = arith.andi %23, %24 : vector<1x2048xi32>
    %c16_i32 = arith.constant 16 : i32
    %26 = vector.broadcast %c16_i32 : i32 to vector<1x2048xi32>
    %27 = arith.cmpi slt, %25, %26 : vector<1x2048xi32>
    %28 = arith.extui %27 : vector<1x2048xi1> to vector<1x2048xi32>
    %29 = arith.sitofp %28 : vector<1x2048xi32> to vector<1x2048xf32>
    %30 = vector.broadcast %29 : vector<1x2048xf32> to vector<16x2048xf32>
    %31 = arith.mulf %22, %30 : vector<16x2048xf32>
    %cst_25 = arith.constant dense<0.000000e+00> : vector<16xf32>
    %32 = vector.multi_reduction <add>, %31, %cst_25 [1] : vector<16x2048xf32> to vector<16xf32>
    %33 = vector.shape_cast %32 : vector<16xf32> to vector<16x1xf32>
    %34 = arith.mulf %31, %31 : vector<16x2048xf32>
    %cst_26 = arith.constant dense<0.000000e+00> : vector<16xf32>
    %35 = vector.multi_reduction <add>, %34, %cst_26 [1] : vector<16x2048xf32> to vector<16xf32>
    %36 = vector.shape_cast %35 : vector<16xf32> to vector<16x1xf32>
    %cst_27 = arith.constant 3.906250e-03 : f32
    %37 = vector.broadcast %cst_27 : f32 to vector<16x1xf32>
    %38 = arith.mulf %33, %37 : vector<16x1xf32>
    %cst_28 = arith.constant 3.906250e-03 : f32
    %39 = vector.broadcast %cst_28 : f32 to vector<16x1xf32>
    %40 = arith.mulf %36, %39 : vector<16x1xf32>
    %41 = arith.mulf %38, %38 : vector<16x1xf32>
    %42 = arith.subf %40, %41 : vector<16x1xf32>
    %cst_29 = arith.constant 0.000000e+00 : f32
    %43 = vector.broadcast %cst_29 : f32 to vector<16x1xf32>
    %44 = arith.maximumf %42, %43 : vector<16x1xf32>
    %45 = vector.broadcast %38 : vector<16x1xf32> to vector<16x2048xf32>
    %46 = arith.subf %22, %45 : vector<16x2048xf32>
    %cst_30 = arith.constant 9.99999974E-6 : f32
    %47 = vector.broadcast %cst_30 : f32 to vector<16x1xf32>
    %48 = arith.addf %44, %47 : vector<16x1xf32>
    %49 = math.rsqrt %48 : vector<16x1xf32>
    %50 = vector.broadcast %49 : vector<16x1xf32> to vector<16x2048xf32>
    %51 = arith.mulf %46, %50 : vector<16x2048xf32>
    %cst_31 = arith.constant 0.000000e+00 : f32
    %52 = vector.broadcast %cst_31 : f32 to vector<16x2048xf32>
    %53 = arith.maximumf %51, %52 : vector<16x2048xf32>
    %c16_32 = arith.constant 16 : index
    %c128_33 = arith.constant 128 : index
    %54 = vector.load %arg4[%c16_32, %c128_33] : memref<48x2304xbf16, #tpu.memory_space<vmem>>, vector<16x2048xbf16>
    %55 = arith.extf %54 : vector<16x2048xbf16> to vector<16x2048xf32>
    %56 = arith.addf %53, %55 : vector<16x2048xf32>
    %c0_34 = arith.constant 0 : index
    %c0_35 = arith.constant 0 : index
    %c0_36 = arith.constant 0 : index
    %57 = vector.load %arg3[%c0_34, %c0_35, %c0_36] : memref<1x16x2048xf32, #tpu.memory_space<vmem>>, vector<1x16x2048xf32>
    %58 = vector.shape_cast %57 : vector<1x16x2048xf32> to vector<16x2048xf32>
    %59 = vector.shape_cast %56 : vector<16x2048xf32> to vector<1x16x2048xf32>
    tpu.vector_store %arg3[%c0_34, %c0_35, %c0_36], %59 {strides = array<i32>} : memref<1x16x2048xf32, #tpu.memory_space<vmem>>, vector<1x16x2048xf32>,
    return
  }
  func.func @transform_0(%arg0: i32) -> (i32, i32, i32) {
    %c0_i32 = arith.constant 0 : i32
    %c0_i32_0 = arith.constant 0 : i32
    %c0_i32_1 = arith.constant 0 : i32
    return %arg0, %c0_i32, %c0_i32_0 : i32, i32, i32
  }
  func.func @transform_1(%arg0: i32) -> (i32, i32, i32) {
    %c0_i32 = arith.constant 0 : i32
    %c0_i32_0 = arith.constant 0 : i32
    %c0_i32_1 = arith.constant 0 : i32
    %c0_i32_2 = arith.constant 0 : i32
    return %c0_i32, %c0_i32_0, %c0_i32_1 : i32, i32, i32
  }
  func.func @transform_2(%arg0: i32) -> (i32, i32, i32) {
    %c0_i32 = arith.constant 0 : i32
    %c0_i32_0 = arith.constant 0 : i32
    %c0_i32_1 = arith.constant 0 : i32
    return %arg0, %c0_i32, %c0_i32_0 : i32, i32, i32
  }
}

</mosaic_0001>

<llo_original>
// kernel: tpu_custom_call.1
$region0: #{tpu_custom_call.1}
  #allocation0 [shape = 'u32[]', space=smem, size = 0x4, offset = 0x4, fixed_abs, tag = 'smem constant byte address 0x4 - core index']
  #allocation1 [shape = 'u32[144,128]{1,0:T(1,128)}', space=vmem, size = 0x12000, scoped, tag = 'internal scratch']
  #allocation2 [shape = 'bf16[48,2304]{1,0:T(16,128)(2,1)}', space=vmem, size = 0x36000, scoped, tag = 'scratch operand']
  %s0 = inlined_call_operand.hbm [shape: bf16[2,16,2432], index: 0, kind: input, shape index: {}]
  %s1 = inlined_call_operand.hbm [shape: bf16[3,16,48], index: 1, kind: input, shape index: {}]
  %s2 = inlined_call_operand.hbm [shape: f32[2,16,2048], index: 2, kind: output, shape index: {}]
  %s3 = sld [smem:[#allocation0]]
  $region49: #{tpu_custom_call.1} parent=0
    _
  %s5 = ssub.s32 1, %s3
  %s6 = scalar_select 0, %s5, %s3
  $region1: #{tpu_custom_call.1} parent=0
    #allocation3 [shape = 'u8[155648]{0}', space=vmem, size = 0x26000, scoped, tag = 'input window, operand 0']
    #allocation4 [shape = 's32[2]{0}', space=sflag, size = 0x8, scoped, tag = 'scoped memory for tpu_custom_call.1']
    #allocation5 [shape = 's32[2]{0}', space=sflag, size = 0x8, scoped, tag = 'scoped memory for tpu_custom_call.1']
    #allocation6 [shape = 'u8[12288]{0}', space=vmem, size = 0x3000, scoped, tag = 'input window, operand 1, single buffered']
    #allocation7 [shape = 's32[1]{0}', space=sflag, size = 0x4, scoped, tag = 'scoped memory for tpu_custom_call.1']
    #allocation8 [shape = 'u8[262144]{0}', space=vmem, size = 0x40000, scoped, tag = 'output window, operand 0']
    %7 = vsyncpa [#allocation4], 0
    %s8 = scalar_lea.sflag [#allocation4], 1
    %9 = vsyncpa %s8, 0
    %10 = vsyncpa [#allocation7], 0
    %11 = vsyncpa [#allocation5], 0
    %s12 = scalar_lea.sflag [#allocation5], 1
    %13 = vsyncpa %s12, 0
    loop: start=0, step=1, limit=4
    $region2: #{tpu_custom_call.1} parent=1 // loop_pre_header
      _
    $region3: #{tpu_custom_call.1} parent=1 // loop_header
      %s15 = sphi 0, %s19
      %p16 = scmp.ge.s32.totalorder %s15, 4
      %s25 = sphi 0, %s27
      %s28 = sphi 0, %s25
      %s29 = sphi 0, %s28
      %s45 = sphi 0, %s29
      %s49 = sphi 0, %s49
      %s51 = sphi 0, %s49
      %s52 = sphi 0, %s51
      %s66 = sphi 0, %s52
      %s72 = sphi 0, %s74
      %s75 = sphi 0, %s72
      %s76 = sphi 0, %s75
      %s92 = sphi 0, %s76
    $region4: #{tpu_custom_call.1} parent=1 // loop_header_branch
      %18 = sbr.rel (%p16) target = $region8
    $region5: #{tpu_custom_call.1} parent=1 // loop_body
      %s20 = ssub.s32 %s15, 1
      %s21 = ssub.s32 %s15, 2
      %s22 = sadd.s32 %s15, 1
      %s23 = ssub.s32 %s15, %s22
      %p24 = scmp.eq.s32.totalorder %s23, 0
      %s26 = sadd.s32 %s25, 1
      %s27 = scalar_select %p24, %s25, %s26
      %p30 = pneg %p24
      %p31 = scmp.eq.s32.totalorder %s15, 1
      %p32 = por %p30, %p31
      %p33 = scmp.ne.s32.totalorder %s25, %s28
      %p34 = scmp.eq.s32.totalorder %s15, 0
      %p35 = por %p33, %p34
      %p36 = scmp.ne.s32.totalorder %s25, %s28
      %p37 = scmp.eq.s32.totalorder %s20, 1
      %p38 = por %p36, %p37
      %p39 = scmp.ne.s32.totalorder %s28, %s29
      %p40 = scmp.eq.s32.totalorder %s20, 0
      %p41 = por %p39, %p40
      %p42 = scmp.ne.s32.totalorder %s28, %s29
      %p43 = scmp.eq.s32.totalorder %s21, 1
      %p44 = por %p42, %p43
      %p46 = scmp.ne.s32.totalorder %s29, %s45
      %p47 = scmp.eq.s32.totalorder %s21, 0
      %p48 = por %p46, %p47
      %s50 = sadd.s32 %s49, 1
      %p53 = scmp.eq.s32.totalorder %s15, 1
      %p54 = scmp.ne.s32.totalorder %s49, %s51
      %p55 = scmp.eq.s32.totalorder %s15, 0
      %p56 = por %p54, %p55
      %p57 = scmp.ne.s32.totalorder %s49, %s51
      %p58 = scmp.eq.s32.totalorder %s20, 1
      %p59 = por %p57, %p58
      %p60 = scmp.ne.s32.totalorder %s51, %s52
      %p61 = scmp.eq.s32.totalorder %s20, 0
      %p62 = por %p60, %p61
      %p63 = scmp.ne.s32.totalorder %s51, %s52
      %p64 = scmp.eq.s32.totalorder %s21, 1
      %p65 = por %p63, %p64
      %p67 = scmp.ne.s32.totalorder %s52, %s66
      %p68 = scmp.eq.s32.totalorder %s21, 0
      %p69 = por %p67, %p68
      %s70 = ssub.s32 %s15, %s22
      %p71 = scmp.eq.s32.totalorder %s70, 0
      %s73 = sadd.s32 %s72, 1
      %s74 = scalar_select %p71, %s72, %s73
      %p77 = pneg %p71
      %p78 = scmp.eq.s32.totalorder %s15, 1
      %p79 = por %p77, %p78
      %p80 = scmp.ne.s32.totalorder %s72, %s75
      %p81 = scmp.eq.s32.totalorder %s15, 0
      %p82 = por %p80, %p81
      %p83 = scmp.ne.s32.totalorder %s72, %s75
      %p84 = scmp.eq.s32.totalorder %s20, 1
      %p85 = por %p83, %p84
      %p86 = scmp.ne.s32.totalorder %s75, %s76
      %p87 = scmp.eq.s32.totalorder %s20, 0
      %p88 = por %p86, %p87
      %p89 = scmp.ne.s32.totalorder %s75, %s76
      %p90 = scmp.eq.s32.totalorder %s21, 1
      %p91 = por %p89, %p90
      %p93 = scmp.ne.s32.totalorder %s76, %s92
      %p94 = scmp.eq.s32.totalorder %s21, 0
      %p95 = por %p93, %p94
      %p96 = scmp.le.s32.totalorder 1, %s15
      %p97 = scmp.lt.s32.totalorder %s15, 3
      %p98 = pnand %p96, %p97
      %p99 = pneg %p98
      // Predicated region
      $region9: #{tpu_custom_call.1} parent=5 // pred_check
        _
      $region10: #{tpu_custom_call.1} parent=5 // pred_check_branch
        %101 = sbr.rel (%p98) target = $region12
      $region11: #{tpu_custom_call.1} parent=5 // pred_region
        %s102 = ssub.s32 %s15, 1
        // Predicated region
        $region13: #{tpu_custom_call.1} parent=11 // pred_check
          %p103 = pneg %p62
        $region14: #{tpu_custom_call.1} parent=11 // pred_check_branch
          %105 = sbr.rel (%p103) target = $region16
        $region15: #{tpu_custom_call.1} parent=11 // pred_region
          %s107 = ssub.s32 384, 384
          %108 = vsyncadd [#allocation7], %s107
          %s109 = sshll.u32 [#allocation6], 4
          %s110 = int_to_ptr.vmem [resolvable:$true] %s109
          %115 = dma.hbm_to_vmem [thread:$0]  %s1, 384, %s110, [#allocation7], 64, 64, 4
        $region16: #{tpu_custom_call.1} parent=11 // pred_fallthru
          _
      $region12: #{tpu_custom_call.1} parent=5 // pred_fallthru
        _
      %p116 = scmp.lt.s32.totalorder %s15, 2
      // Predicated region
      $region17: #{tpu_custom_call.1} parent=5 // pred_check
        %p117 = pneg %p116
      $region18: #{tpu_custom_call.1} parent=5 // pred_check_branch
        %119 = sbr.rel (%p117) target = $region20
      $region19: #{tpu_custom_call.1} parent=5 // pred_region
        // Predicated region
        $region21: #{tpu_custom_call.1} parent=19 // pred_check
          %p120 = pneg %p35
        $region22: #{tpu_custom_call.1} parent=19 // pred_check_branch
          %122 = sbr.rel (%p120) target = $region24
        $region23: #{tpu_custom_call.1} parent=19 // pred_region
          %s123 = sand.u32 %s25, 1
          %s124 = scalar_lea.sflag [#allocation4], %s123
          %s125 = sand.u32 %s25, 1
          %s126 = smul.addr %s125, 152
          %s127 = scalar_lea.vmem [#allocation3], %s126
          %s129 = ssub.s32 2432, 2432
          %130 = vsyncadd %s124, %s129
          %s131 = smul.addr %s15, 38
          %s132 = smul.addr %s131, 64
          %s133 = scalar_lea.hbm %s0, %s132
          %s134 = sshll.u32 %s127, 4
          %s135 = int_to_ptr.vmem [resolvable:$true] %s134
          %140 = dma.hbm_to_vmem [thread:$0]  %s133, 2432, %s135, %s124, 1216, 1216, 76
        $region24: #{tpu_custom_call.1} parent=19 // pred_fallthru
          _
      $region20: #{tpu_custom_call.1} parent=5 // pred_fallthru
        _
      %p141 = scmp.le.s32.totalorder 1, %s15
      %p142 = scmp.lt.s32.totalorder %s15, 3
      %p143 = pnand %p141, %p142
      %p144 = pneg %p143
      // Predicated region
      $region25: #{tpu_custom_call.1} parent=5 // pred_check
        _
      $region26: #{tpu_custom_call.1} parent=5 // pred_check_branch
        %146 = sbr.rel (%p143) target = $region28
      $region27: #{tpu_custom_call.1} parent=5 // pred_region
        %s147 = ssub.s32 %s15, 1
        %s148 = sand.u32 %s28, 1
        %s149 = scalar_lea.sflag [#allocation4], %s148
        %s150 = sand.u32 %s28, 1
        %s151 = smul.addr %s150, 152
        %s152 = scalar_lea.vmem [#allocation3], %s151
        // Predicated region
        $region29: #{tpu_custom_call.1} parent=27 // pred_check
          %p153 = pneg %p41
        $region30: #{tpu_custom_call.1} parent=27 // pred_check_branch
          %155 = sbr.rel (%p153) target = $region32
        $region31: #{tpu_custom_call.1} parent=27 // pred_region
          %156 = dma.done %s149, 2432
        $region32: #{tpu_custom_call.1} parent=27 // pred_fallthru
          _
        // Predicated region
        $region33: #{tpu_custom_call.1} parent=27 // pred_check
          %p157 = pneg %p62
        $region34: #{tpu_custom_call.1} parent=27 // pred_check_branch
          %159 = sbr.rel (%p157) target = $region36
        $region35: #{tpu_custom_call.1} parent=27 // pred_region
          %160 = dma.done [#allocation7], 384
        $region36: #{tpu_custom_call.1} parent=27 // pred_fallthru
          _
        %s161 = sand.u32 %s28, 1
        %s162 = scalar_lea.sflag [#allocation4], %s161
        %s163 = sand.u32 %s28, 1
        %s164 = smul.addr %s163, 152
        %s165 = scalar_lea.vmem [#allocation3], %s164
        %p166 = pneg %p41
        %p167 = pneg %p38
        %p168 = pneg %p62
        %p169 = pneg %p59
        %p170 = pneg %p88
        %p171 = pneg %p85
        %s172 = sand.u32 %s75, 1
        %s173 = scalar_lea.sflag [#allocation5], %s172
        %s174 = sand.u32 %s75, 1
        %s175 = smul.addr %s174, 256
        %s176 = scalar_lea.vmem [#allocation8], %s175
        %v178 = vld [vmem:[%s152] sm:$0xff]
        %v179 = vld [vmem:[%s152 + $0x8] sm:$0xff]
        %v180 = vld [vmem:[%s152 + $0x10] sm:$0xff]
        %v181 = vld [vmem:[%s152 + $0x18] sm:$0xff]
        %v182 = vld [vmem:[%s152 + $0x20] sm:$0xff]
        %v183 = vld [vmem:[%s152 + $0x28] sm:$0xff]
        %v184 = vld [vmem:[%s152 + $0x30] sm:$0xff]
        %v185 = vld [vmem:[%s152 + $0x38] sm:$0xff]
        %v186 = vld [vmem:[%s152 + $0x40] sm:$0xff]
        %v187 = vld [vmem:[%s152 + $0x4c] sm:$0xff]
        %v188 = vld [vmem:[%s152 + $0x54] sm:$0xff]
        %v189 = vld [vmem:[%s152 + $0x5c] sm:$0xff]
        %v190 = vld [vmem:[%s152 + $0x64] sm:$0xff]
        %v191 = vld [vmem:[%s152 + $0x6c] sm:$0xff]
        %v192 = vld [vmem:[%s152 + $0x74] sm:$0xff]
        %v193 = vld [vmem:[%s152 + $0x7c] sm:$0xff]
        %v194 = vld [vmem:[%s152 + $0x84] sm:$0xff]
        %v195 = vld [vmem:[%s152 + $0x8c] sm:$0xff]
        %v214 = vunpack.c.l.b16 %v178
        %v215 = vunpack.c.h.b16 %v178
        %v216 = vunpack.c.l.b16 %v179
        %v217 = vunpack.c.h.b16 %v179
        %v218 = vunpack.c.l.b16 %v180
        %v219 = vunpack.c.h.b16 %v180
        %v220 = vunpack.c.l.b16 %v181
        %v221 = vunpack.c.h.b16 %v181
        %v222 = vunpack.c.l.b16 %v182
        %v223 = vunpack.c.h.b16 %v182
        %v224 = vunpack.c.l.b16 %v183
        %v225 = vunpack.c.h.b16 %v183
        %v226 = vunpack.c.l.b16 %v184
        %v227 = vunpack.c.h.b16 %v184
        %v228 = vunpack.c.l.b16 %v185
        %v229 = vunpack.c.h.b16 %v185
        %v230 = vunpack.c.l.b16 %v186
        %v231 = vunpack.c.h.b16 %v186
        %v232 = vunpack.c.l.b16 %v187
        %v233 = vunpack.c.h.b16 %v187
        %v234 = vunpack.c.l.b16 %v188
        %v235 = vunpack.c.h.b16 %v188
        %v236 = vunpack.c.l.b16 %v189
        %v237 = vunpack.c.h.b16 %v189
        %v238 = vunpack.c.l.b16 %v190
        %v239 = vunpack.c.h.b16 %v190
        %v240 = vunpack.c.l.b16 %v191
        %v241 = vunpack.c.h.b16 %v191
        %v242 = vunpack.c.l.b16 %v192
        %v243 = vunpack.c.h.b16 %v192
        %v244 = vunpack.c.l.b16 %v193
        %v245 = vunpack.c.h.b16 %v193
        %v246 = vunpack.c.l.b16 %v194
        %v247 = vunpack.c.h.b16 %v194
        %v248 = vunpack.c.l.b16 %v195
        %v249 = vunpack.c.h.b16 %v195
        %v250 = vpack.c.b16 %v232, %v214
        %v251 = vpack.c.b16 %v233, %v215
        %v252 = vpack.c.b16 %v234, %v216
        %v253 = vpack.c.b16 %v235, %v217
        %v254 = vpack.c.b16 %v236, %v218
        %v255 = vpack.c.b16 %v237, %v219
        %v256 = vpack.c.b16 %v238, %v220
        %v257 = vpack.c.b16 %v239, %v221
        %v258 = vpack.c.b16 %v240, %v222
        %v259 = vpack.c.b16 %v241, %v223
        %v260 = vpack.c.b16 %v242, %v224
        %v261 = vpack.c.b16 %v243, %v225
        %v262 = vpack.c.b16 %v244, %v226
        %v263 = vpack.c.b16 %v245, %v227
        %v264 = vpack.c.b16 %v246, %v228
        %v265 = vpack.c.b16 %v247, %v229
        %v266 = vpack.c.b16 %v248, %v230
        %v267 = vpack.c.b16 %v249, %v231
        %286 = vst [vmem:[#allocation2] sm:$0xff] %v250
        %287 = vst [vmem:[#allocation2 + $0x8] sm:$0xff] %v251
        %288 = vst [vmem:[#allocation2 + $0x10] sm:$0xff] %v252
        %289 = vst [vmem:[#allocation2 + $0x18] sm:$0xff] %v253
        %290 = vst [vmem:[#allocation2 + $0x20] sm:$0xff] %v254
        %291 = vst [vmem:[#allocation2 + $0x28] sm:$0xff] %v255
        %292 = vst [vmem:[#allocation2 + $0x30] sm:$0xff] %v256
        %293 = vst [vmem:[#allocation2 + $0x38] sm:$0xff] %v257
        %294 = vst [vmem:[#allocation2 + $0x40] sm:$0xff] %v258
        %295 = vst [vmem:[#allocation2 + $0x48] sm:$0xff] %v259
        %296 = vst [vmem:[#allocation2 + $0x50] sm:$0xff] %v260
        %297 = vst [vmem:[#allocation2 + $0x58] sm:$0xff] %v261
        %298 = vst [vmem:[#allocation2 + $0x60] sm:$0xff] %v262
        %299 = vst [vmem:[#allocation2 + $0x68] sm:$0xff] %v263
        %300 = vst [vmem:[#allocation2 + $0x70] sm:$0xff] %v264
        %301 = vst [vmem:[#allocation2 + $0x78] sm:$0xff] %v265
        %302 = vst [vmem:[#allocation2 + $0x80] sm:$0xff] %v266
        %303 = vst [vmem:[#allocation2 + $0x88] sm:$0xff] %v267
        %v304 = vld [vmem:[%s152] sm:$0xff]
        %v305 = vld [vmem:[%s152 + $0x8] sm:$0xff]
        %v306 = vld [vmem:[%s152 + $0x10] sm:$0xff]
        %v307 = vld [vmem:[%s152 + $0x18] sm:$0xff]
        %v308 = vld [vmem:[%s152 + $0x20] sm:$0xff]
        %v309 = vld [vmem:[%s152 + $0x28] sm:$0xff]
        %v310 = vld [vmem:[%s152 + $0x30] sm:$0xff]
        %v311 = vld [vmem:[%s152 + $0x38] sm:$0xff]
        %v312 = vld [vmem:[%s152 + $0x40] sm:$0xff]
        %v313 = vld [vmem:[%s152 + $0x48] sm:$0xf]
        %v314 = vld [vmem:[%s152 + $0x4c] sm:$0xff]
        %v315 = vld [vmem:[%s152 + $0x54] sm:$0xff]
        %v316 = vld [vmem:[%s152 + $0x5c] sm:$0xff]
        %v317 = vld [vmem:[%s152 + $0x64] sm:$0xff]
        %v318 = vld [vmem:[%s152 + $0x6c] sm:$0xff]
        %v319 = vld [vmem:[%s152 + $0x74] sm:$0xff]
        %v320 = vld [vmem:[%s152 + $0x7c] sm:$0xff]
        %v321 = vld [vmem:[%s152 + $0x84] sm:$0xff]
        %v322 = vld [vmem:[%s152 + $0x8c] sm:$0xff]
        %v323 = vld [vmem:[%s152 + $0x94] sm:$0xf]
        %v344 = vunpack.c.l.b16 %v304
        %v345 = vunpack.c.h.b16 %v304
        %v346 = vunpack.c.l.b16 %v305
        %v347 = vunpack.c.h.b16 %v305
        %v348 = vunpack.c.l.b16 %v306
        %v349 = vunpack.c.h.b16 %v306
        %v350 = vunpack.c.l.b16 %v307
        %v351 = vunpack.c.h.b16 %v307
        %v352 = vunpack.c.l.b16 %v308
        %v353 = vunpack.c.h.b16 %v308
        %v354 = vunpack.c.l.b16 %v309
        %v355 = vunpack.c.h.b16 %v309
        %v356 = vunpack.c.l.b16 %v310
        %v357 = vunpack.c.h.b16 %v310
        %v358 = vunpack.c.l.b16 %v311
        %v359 = vunpack.c.h.b16 %v311
        %v360 = vunpack.c.l.b16 %v312
        %v361 = vunpack.c.h.b16 %v312
        %v362 = vunpack.c.l.b16 %v313
        %v363 = vunpack.c.l.b16 %v314
        %v364 = vunpack.c.h.b16 %v314
        %v365 = vunpack.c.l.b16 %v315
        %v366 = vunpack.c.h.b16 %v315
        %v367 = vunpack.c.l.b16 %v316
        %v368 = vunpack.c.h.b16 %v316
        %v369 = vunpack.c.l.b16 %v317
        %v370 = vunpack.c.h.b16 %v317
        %v371 = vunpack.c.l.b16 %v318
        %v372 = vunpack.c.h.b16 %v318
        %v373 = vunpack.c.l.b16 %v319
        %v374 = vunpack.c.h.b16 %v319
        %v375 = vunpack.c.l.b16 %v320
        %v376 = vunpack.c.h.b16 %v320
        %v377 = vunpack.c.l.b16 %v321
        %v378 = vunpack.c.h.b16 %v321
        %v379 = vunpack.c.l.b16 %v322
        %v380 = vunpack.c.h.b16 %v322
        %v381 = vunpack.c.l.b16 %v323
        %v382 = vpack.c.b16 %v363, %v344
        %v383 = vpack.c.b16 %v364, %v345
        %v384 = vpack.c.b16 %v365, %v346
        %v385 = vpack.c.b16 %v366, %v347
        %v386 = vpack.c.b16 %v367, %v348
        %v387 = vpack.c.b16 %v368, %v349
        %v388 = vpack.c.b16 %v369, %v350
        %v389 = vpack.c.b16 %v370, %v351
        %v390 = vpack.c.b16 %v371, %v352
        %v391 = vpack.c.b16 %v372, %v353
        %v392 = vpack.c.b16 %v373, %v354
        %v393 = vpack.c.b16 %v374, %v355
        %v394 = vpack.c.b16 %v375, %v356
        %v395 = vpack.c.b16 %v376, %v357
        %v396 = vpack.c.b16 %v377, %v358
        %v397 = vpack.c.b16 %v378, %v359
        %v398 = vpack.c.b16 %v379, %v360
        %v399 = vpack.c.b16 %v380, %v361
        %v400 = vpack.c.b16 %v381, %v362
        %401 = vrot.lane.b32.xlu0 %v382, 127
        %v402 = vpop.permute.xlu0 %401
        %403 = vrot.lane.b32.xlu0 %v383, 127
        %v404 = vpop.permute.xlu0 %403
        %405 = vrot.lane.b32.xlu0 %v384, 127
        %v406 = vpop.permute.xlu0 %405
        %407 = vrot.lane.b32.xlu0 %v385, 127
        %v408 = vpop.permute.xlu0 %407
        %409 = vrot.lane.b32.xlu0 %v386, 127
        %v410 = vpop.permute.xlu0 %409
        %411 = vrot.lane.b32.xlu0 %v387, 127
        %v412 = vpop.permute.xlu0 %411
        %413 = vrot.lane.b32.xlu0 %v388, 127
        %v414 = vpop.permute.xlu0 %413
        %415 = vrot.lane.b32.xlu0 %v389, 127
        %v416 = vpop.permute.xlu0 %415
        %417 = vrot.lane.b32.xlu0 %v390, 127
        %v418 = vpop.permute.xlu0 %417
        %419 = vrot.lane.b32.xlu0 %v391, 127
        %v420 = vpop.permute.xlu0 %419
        %421 = vrot.lane.b32.xlu0 %v392, 127
        %v422 = vpop.permute.xlu0 %421
        %423 = vrot.lane.b32.xlu0 %v393, 127
        %v424 = vpop.permute.xlu0 %423
        %425 = vrot.lane.b32.xlu0 %v394, 127
        %v426 = vpop.permute.xlu0 %425
        %427 = vrot.lane.b32.xlu0 %v395, 127
        %v428 = vpop.permute.xlu0 %427
        %429 = vrot.lane.b32.xlu0 %v396, 127
        %v430 = vpop.permute.xlu0 %429
        %431 = vrot.lane.b32.xlu0 %v397, 127
        %v432 = vpop.permute.xlu0 %431
        %433 = vrot.lane.b32.xlu0 %v398, 127
        %v434 = vpop.permute.xlu0 %433
        %435 = vrot.lane.b32.xlu0 %v399, 127
        %v436 = vpop.permute.xlu0 %435
        %437 = vrot.lane.b32.xlu0 %v400, 127
        %v438 = vpop.permute.xlu0 %437
        %vm439 = vcmask 1039360
        %v440 = vsel %vm439, %v402, %v404
        %v441 = vsel %vm439, %v404, %v406
        %v442 = vsel %vm439, %v406, %v408
        %v443 = vsel %vm439, %v408, %v410
        %v444 = vsel %vm439, %v410, %v412
        %v445 = vsel %vm439, %v412, %v414
        %v446 = vsel %vm439, %v414, %v416
        %v447 = vsel %vm439, %v416, %v418
        %v448 = vsel %vm439, %v418, %v420
        %v449 = vsel %vm439, %v420, %v422
        %v450 = vsel %vm439, %v422, %v424
        %v451 = vsel %vm439, %v424, %v426
        %v452 = vsel %vm439, %v426, %v428
        %v453 = vsel %vm439, %v428, %v430
        %v454 = vsel %vm439, %v430, %v432
        %v455 = vsel %vm439, %v432, %v434
        %v456 = vsel %vm439, %v434, %v436
        %v457 = vsel %vm439, %v436, %v438
        %476 = vst [vmem:[#allocation2 + $0x90] sm:$0xff] %v440
        %477 = vst [vmem:[#allocation2 + $0x98] sm:$0xff] %v441
        %478 = vst [vmem:[#allocation2 + $0xa0] sm:$0xff] %v442
        %479 = vst [vmem:[#allocation2 + $0xa8] sm:$0xff] %v443
        %480 = vst [vmem:[#allocation2 + $0xb0] sm:$0xff] %v444
        %481 = vst [vmem:[#allocation2 + $0xb8] sm:$0xff] %v445
        %482 = vst [vmem:[#allocation2 + $0xc0] sm:$0xff] %v446
        %483 = vst [vmem:[#allocation2 + $0xc8] sm:$0xff] %v447
        %484 = vst [vmem:[#allocation2 + $0xd0] sm:$0xff] %v448
        %485 = vst [vmem:[#allocation2 + $0xd8] sm:$0xff] %v449
        %486 = vst [vmem:[#allocation2 + $0xe0] sm:$0xff] %v450
        %487 = vst [vmem:[#allocation2 + $0xe8] sm:$0xff] %v451
        %488 = vst [vmem:[#allocation2 + $0xf0] sm:$0xff] %v452
        %489 = vst [vmem:[#allocation2 + $0xf8] sm:$0xff] %v453
        %490 = vst [vmem:[#allocation2 + $0x100] sm:$0xff] %v454
        %491 = vst [vmem:[#allocation2 + $0x108] sm:$0xff] %v455
        %492 = vst [vmem:[#allocation2 + $0x110] sm:$0xff] %v456
        %493 = vst [vmem:[#allocation2 + $0x118] sm:$0xff] %v457
        %v494 = vld [vmem:[%s152] sm:$0xff]
        %v495 = vld [vmem:[%s152 + $0x8] sm:$0xff]
        %v496 = vld [vmem:[%s152 + $0x10] sm:$0xff]
        %v497 = vld [vmem:[%s152 + $0x18] sm:$0xff]
        %v498 = vld [vmem:[%s152 + $0x20] sm:$0xff]
        %v499 = vld [vmem:[%s152 + $0x28] sm:$0xff]
        %v500 = vld [vmem:[%s152 + $0x30] sm:$0xff]
        %v501 = vld [vmem:[%s152 + $0x38] sm:$0xff]
        %v502 = vld [vmem:[%s152 + $0x40] sm:$0xff]
        %v503 = vld [vmem:[%s152 + $0x48] sm:$0xf]
        %v504 = vld [vmem:[%s152 + $0x4c] sm:$0xff]
        %v505 = vld [vmem:[%s152 + $0x54] sm:$0xff]
        %v506 = vld [vmem:[%s152 + $0x5c] sm:$0xff]
        %v507 = vld [vmem:[%s152 + $0x64] sm:$0xff]
        %v508 = vld [vmem:[%s152 + $0x6c] sm:$0xff]
        %v509 = vld [vmem:[%s152 + $0x74] sm:$0xff]
        %v510 = vld [vmem:[%s152 + $0x7c] sm:$0xff]
        %v511 = vld [vmem:[%s152 + $0x84] sm:$0xff]
        %v512 = vld [vmem:[%s152 + $0x8c] sm:$0xff]
        %v513 = vld [vmem:[%s152 + $0x94] sm:$0xf]
        %v534 = vunpack.c.l.b16 %v494
        %v535 = vunpack.c.h.b16 %v494
        %v536 = vunpack.c.l.b16 %v495
        %v537 = vunpack.c.h.b16 %v495
        %v538 = vunpack.c.l.b16 %v496
        %v539 = vunpack.c.h.b16 %v496
        %v540 = vunpack.c.l.b16 %v497
        %v541 = vunpack.c.h.b16 %v497
        %v542 = vunpack.c.l.b16 %v498
        %v543 = vunpack.c.h.b16 %v498
        %v544 = vunpack.c.l.b16 %v499
        %v545 = vunpack.c.h.b16 %v499
        %v546 = vunpack.c.l.b16 %v500
        %v547 = vunpack.c.h.b16 %v500
        %v548 = vunpack.c.l.b16 %v501
        %v549 = vunpack.c.h.b16 %v501
        %v550 = vunpack.c.l.b16 %v502
        %v551 = vunpack.c.h.b16 %v502
        %v552 = vunpack.c.l.b16 %v503
        %v553 = vunpack.c.l.b16 %v504
        %v554 = vunpack.c.h.b16 %v504
        %v555 = vunpack.c.l.b16 %v505
        %v556 = vunpack.c.h.b16 %v505
        %v557 = vunpack.c.l.b16 %v506
        %v558 = vunpack.c.h.b16 %v506
        %v559 = vunpack.c.l.b16 %v507
        %v560 = vunpack.c.h.b16 %v507
        %v561 = vunpack.c.l.b16 %v508
        %v562 = vunpack.c.h.b16 %v508
        %v563 = vunpack.c.l.b16 %v509
        %v564 = vunpack.c.h.b16 %v509
        %v565 = vunpack.c.l.b16 %v510
        %v566 = vunpack.c.h.b16 %v510
        %v567 = vunpack.c.l.b16 %v511
        %v568 = vunpack.c.h.b16 %v511
        %v569 = vunpack.c.l.b16 %v512
        %v570 = vunpack.c.h.b16 %v512
        %v571 = vunpack.c.l.b16 %v513
        %v572 = vpack.c.b16 %v553, %v534
        %v573 = vpack.c.b16 %v554, %v535
        %v574 = vpack.c.b16 %v555, %v536
        %v575 = vpack.c.b16 %v556, %v537
        %v576 = vpack.c.b16 %v557, %v538
        %v577 = vpack.c.b16 %v558, %v539
        %v578 = vpack.c.b16 %v559, %v540
        %v579 = vpack.c.b16 %v560, %v541
        %v580 = vpack.c.b16 %v561, %v542
        %v581 = vpack.c.b16 %v562, %v543
        %v582 = vpack.c.b16 %v563, %v544
        %v583 = vpack.c.b16 %v564, %v545
        %v584 = vpack.c.b16 %v565, %v546
        %v585 = vpack.c.b16 %v566, %v547
        %v586 = vpack.c.b16 %v567, %v548
        %v587 = vpack.c.b16 %v568, %v549
        %v588 = vpack.c.b16 %v569, %v550
        %v589 = vpack.c.b16 %v570, %v551
        %v590 = vpack.c.b16 %v571, %v552
        %591 = vrot.lane.b32.xlu0 %v572, 126
        %v592 = vpop.permute.xlu0 %591
        %593 = vrot.lane.b32.xlu0 %v573, 126
        %v594 = vpop.permute.xlu0 %593
        %595 = vrot.lane.b32.xlu0 %v574, 126
        %v596 = vpop.permute.xlu0 %595
        %597 = vrot.lane.b32.xlu0 %v575, 126
        %v598 = vpop.permute.xlu0 %597
        %599 = vrot.lane.b32.xlu0 %v576, 126
        %v600 = vpop.permute.xlu0 %599
        %601 = vrot.lane.b32.xlu0 %v577, 126
        %v602 = vpop.permute.xlu0 %601
        %603 = vrot.lane.b32.xlu0 %v578, 126
        %v604 = vpop.permute.xlu0 %603
        %605 = vrot.lane.b32.xlu0 %v579, 126
        %v606 = vpop.permute.xlu0 %605
        %607 = vrot.lane.b32.xlu0 %v580, 126
        %v608 = vpop.permute.xlu0 %607
        %609 = vrot.lane.b32.xlu0 %v581, 126
        %v610 = vpop.permute.xlu0 %609
        %611 = vrot.lane.b32.xlu0 %v582, 126
        %v612 = vpop.permute.xlu0 %611
        %613 = vrot.lane.b32.xlu0 %v583, 126
        %v614 = vpop.permute.xlu0 %613
        %615 = vrot.lane.b32.xlu0 %v584, 126
        %v616 = vpop.permute.xlu0 %615
        %617 = vrot.lane.b32.xlu0 %v585, 126
        %v618 = vpop.permute.xlu0 %617
        %619 = vrot.lane.b32.xlu0 %v586, 126
        %v620 = vpop.permute.xlu0 %619
        %621 = vrot.lane.b32.xlu0 %v587, 126
        %v622 = vpop.permute.xlu0 %621
        %623 = vrot.lane.b32.xlu0 %v588, 126
        %v624 = vpop.permute.xlu0 %623
        %625 = vrot.lane.b32.xlu0 %v589, 126
        %v626 = vpop.permute.xlu0 %625
        %627 = vrot.lane.b32.xlu0 %v590, 126
        %v628 = vpop.permute.xlu0 %627
        %vm629 = vcmask 1031168
        %v630 = vsel %vm629, %v592, %v594
        %v631 = vsel %vm629, %v594, %v596
        %v632 = vsel %vm629, %v596, %v598
        %v633 = vsel %vm629, %v598, %v600
        %v634 = vsel %vm629, %v600, %v602
        %v635 = vsel %vm629, %v602, %v604
        %v636 = vsel %vm629, %v604, %v606
        %v637 = vsel %vm629, %v606, %v608
        %v638 = vsel %vm629, %v608, %v610
        %v639 = vsel %vm629, %v610, %v612
        %v640 = vsel %vm629, %v612, %v614
        %v641 = vsel %vm629, %v614, %v616
        %v642 = vsel %vm629, %v616, %v618
        %v643 = vsel %vm629, %v618, %v620
        %v644 = vsel %vm629, %v620, %v622
        %v645 = vsel %vm629, %v622, %v624
        %v646 = vsel %vm629, %v624, %v626
        %v647 = vsel %vm629, %v626, %v628
        %666 = vst [vmem:[#allocation2 + $0x120] sm:$0xff] %v630
        %667 = vst [vmem:[#allocation2 + $0x128] sm:$0xff] %v631
        %668 = vst [vmem:[#allocation2 + $0x130] sm:$0xff] %v632
        %669 = vst [vmem:[#allocation2 + $0x138] sm:$0xff] %v633
        %670 = vst [vmem:[#allocation2 + $0x140] sm:$0xff] %v634
        %671 = vst [vmem:[#allocation2 + $0x148] sm:$0xff] %v635
        %672 = vst [vmem:[#allocation2 + $0x150] sm:$0xff] %v636
        %673 = vst [vmem:[#allocation2 + $0x158] sm:$0xff] %v637
        %674 = vst [vmem:[#allocation2 + $0x160] sm:$0xff] %v638
        %675 = vst [vmem:[#allocation2 + $0x168] sm:$0xff] %v639
        %676 = vst [vmem:[#allocation2 + $0x170] sm:$0xff] %v640
        %677 = vst [vmem:[#allocation2 + $0x178] sm:$0xff] %v641
        %678 = vst [vmem:[#allocation2 + $0x180] sm:$0xff] %v642
        %679 = vst [vmem:[#allocation2 + $0x188] sm:$0xff] %v643
        %680 = vst [vmem:[#allocation2 + $0x190] sm:$0xff] %v644
        %681 = vst [vmem:[#allocation2 + $0x198] sm:$0xff] %v645
        %682 = vst [vmem:[#allocation2 + $0x1a0] sm:$0xff] %v646
        %683 = vst [vmem:[#allocation2 + $0x1a8] sm:$0xff] %v647
        %v684 = vld [vmem:[#allocation6] sm:$0xf]
        %v685 = vld [vmem:[#allocation6 + $0x4] sm:$0xf]
        %v686 = vld [vmem:[#allocation2] sm:$0xff]
        %v687 = vld [vmem:[#allocation2 + $0x8] sm:$0xff]
        %v688 = vld [vmem:[#allocation2 + $0x10] sm:$0xff]
        %v689 = vld [vmem:[#allocation2 + $0x18] sm:$0xff]
        %v690 = vld [vmem:[#allocation2 + $0x20] sm:$0xff]
        %v691 = vld [vmem:[#allocation2 + $0x28] sm:$0xff]
        %v692 = vld [vmem:[#allocation2 + $0x30] sm:$0xff]
        %v693 = vld [vmem:[#allocation2 + $0x38] sm:$0xff]
        %v694 = vld [vmem:[#allocation2 + $0x40] sm:$0xff]
        %v695 = vld [vmem:[#allocation2 + $0x48] sm:$0xff]
        %v696 = vld [vmem:[#allocation2 + $0x50] sm:$0xff]
        %v697 = vld [vmem:[#allocation2 + $0x58] sm:$0xff]
        %v698 = vld [vmem:[#allocation2 + $0x60] sm:$0xff]
        %v699 = vld [vmem:[#allocation2 + $0x68] sm:$0xff]
        %v700 = vld [vmem:[#allocation2 + $0x70] sm:$0xff]
        %v701 = vld [vmem:[#allocation2 + $0x78] sm:$0xff]
        %v702 = vld [vmem:[#allocation2 + $0x90] sm:$0xff]
        %v703 = vld [vmem:[#allocation2 + $0x98] sm:$0xff]
        %v704 = vld [vmem:[#allocation2 + $0xa0] sm:$0xff]
        %v705 = vld [vmem:[#allocation2 + $0xa8] sm:$0xff]
        %v706 = vld [vmem:[#allocation2 + $0xb0] sm:$0xff]
        %v707 = vld [vmem:[#allocation2 + $0xb8] sm:$0xff]
        %v708 = vld [vmem:[#allocation2 + $0xc0] sm:$0xff]
        %v709 = vld [vmem:[#allocation2 + $0xc8] sm:$0xff]
        %v710 = vld [vmem:[#allocation2 + $0xd0] sm:$0xff]
        %v711 = vld [vmem:[#allocation2 + $0xd8] sm:$0xff]
        %v712 = vld [vmem:[#allocation2 + $0xe0] sm:$0xff]
        %v713 = vld [vmem:[#allocation2 + $0xe8] sm:$0xff]
        %v714 = vld [vmem:[#allocation2 + $0xf0] sm:$0xff]
        %v715 = vld [vmem:[#allocation2 + $0xf8] sm:$0xff]
        %v716 = vld [vmem:[#allocation2 + $0x100] sm:$0xff]
        %v717 = vld [vmem:[#allocation2 + $0x108] sm:$0xff]
        %v718 = vld [vmem:[#allocation2 + $0x120] sm:$0xff]
        %v719 = vld [vmem:[#allocation2 + $0x128] sm:$0xff]
        %v720 = vld [vmem:[#allocation2 + $0x130] sm:$0xff]
        %v721 = vld [vmem:[#allocation2 + $0x138] sm:$0xff]
        %v722 = vld [vmem:[#allocation2 + $0x140] sm:$0xff]
        %v723 = vld [vmem:[#allocation2 + $0x148] sm:$0xff]
        %v724 = vld [vmem:[#allocation2 + $0x150] sm:$0xff]
        %v725 = vld [vmem:[#allocation2 + $0x158] sm:$0xff]
        %v726 = vld [vmem:[#allocation2 + $0x160] sm:$0xff]
        %v727 = vld [vmem:[#allocation2 + $0x168] sm:$0xff]
        %v728 = vld [vmem:[#allocation2 + $0x170] sm:$0xff]
        %v729 = vld [vmem:[#allocation2 + $0x178] sm:$0xff]
        %v730 = vld [vmem:[#allocation2 + $0x180] sm:$0xff]
        %v731 = vld [vmem:[#allocation2 + $0x188] sm:$0xff]
        %v732 = vld [vmem:[#allocation2 + $0x190] sm:$0xff]
        %v733 = vld [vmem:[#allocation2 + $0x198] sm:$0xff]
        %s734 = scalar_lea.vmem [#allocation6], 8
        %v735 = vld [vmem:[%s734] sm:$0xf]
        %v736 = vld [vmem:[%s734 + $0x4] sm:$0xf]
        %v737 = vld [vmem:[#allocation2 + $0x80] sm:$0xff]
        %v738 = vld [vmem:[#allocation2 + $0x110] sm:$0xff]
        %v739 = vld [vmem:[#allocation2 + $0x1a0] sm:$0xff]
        %v742 = vunpack.c.l.b16 %v735
        %v743 = vunpack.c.l.b16 %v736
        %v744 = vpack.c.b16 %v743, %v742
        %vm745 = vcmask 392192
        %v747 = vsel %vm745, %v744, 0
        %749 = vmatprep.subr.bf16.mxu0 %v688
        %750 = vmatpush1.bf16.msra.mxu0 %v687
        %751 = vmatprep.subr.bf16.mxu0 %v704
        %752 = vmatpush1.bf16.msra.mxu0 %v703
        %753 = vmatprep.subr.bf16.mxu0 %v720
        %754 = vmatpush1.bf16.msra.mxu0 %v719
        %755 = vmatprep.subr.bf16.mxu0 0
        %756 = vmatpush1.bf16.msra.mxu0 0
        %757 = vmatprep.subr.bf16.mxu0 0
        %758 = vmatpush1.bf16.msra.mxu0 0
        %759 = vmatprep.subr.bf16.mxu0 0
        %760 = vmatpush1.bf16.msra.mxu0 0
        %761 = vmatprep.subr.bf16.mxu0 0
        %762 = vmatpush1.bf16.msra.mxu0 0
        %763 = vmatprep.subr.bf16.mxu0 0
        %764 = vmatpush1.bf16.msra.mxu0 0
        %765 = vmatprep.subr.bf16.mxu0 0
        %766 = vmatpush1.bf16.msra.mxu0 0
        %767 = vmatprep.subr.bf16.mxu0 0
        %768 = vmatpush1.bf16.msra.mxu0 0
        %769 = vmatprep.subr.bf16.mxu0 0
        %770 = vmatpush1.bf16.msra.mxu0 0
        %771 = vmatprep.subr.bf16.mxu0 0
        %772 = vmatpush1.bf16.msra.mxu0 0
        %773 = vmatprep.subr.bf16.mxu0 0
        %774 = vmatpush1.bf16.msra.mxu0 0
        %775 = vmatprep.subr.bf16.mxu0 0
        %776 = vmatpush1.bf16.msra.mxu0 0
        %777 = vmatprep.subr.bf16.mxu0 0
        %778 = vmatpush1.bf16.msra.mxu0 0
        %779 = vmatprep.subr.bf16.mxu0 0
        %780 = vmatpush1.bf16.msra.mxu0 0
        %781 = vmatprep.mubr.bf16.mxu0 0
        %782 = vmatmul.mubr.bf16.gmra.mrb[0].mxu0 %v747
        %v783 = vpop.f32.mrb[0].mxu0
        %v784 = vadd.f32 0.0, %v783
        %v785 = vpop.f32.mrb[0].mxu0
        %v786 = vadd.f32 0.0, %v785
        %v787 = vpop.f32.mrb[0].mxu0
        %v788 = vadd.f32 0.0, %v787
        %v789 = vpop.f32.mrb[0].mxu0
        %v790 = vadd.f32 0.0, %v789
        %791 = vdwg.mxu0
        %792 = vmatprep.subr.bf16.mxu0 %v690
        %793 = vmatpush1.bf16.msra.mxu0 %v689
        %794 = vmatprep.subr.bf16.mxu0 %v706
        %795 = vmatpush1.bf16.msra.mxu0 %v705
        %796 = vmatprep.subr.bf16.mxu0 %v722
        %797 = vmatpush1.bf16.msra.mxu0 %v721
        %798 = vmatprep.subr.bf16.mxu0 0
        %799 = vmatpush1.bf16.msra.mxu0 0
        %800 = vmatprep.subr.bf16.mxu0 0
        %801 = vmatpush1.bf16.msra.mxu0 0
        %802 = vmatprep.subr.bf16.mxu0 0
        %803 = vmatpush1.bf16.msra.mxu0 0
        %804 = vmatprep.subr.bf16.mxu0 0
        %805 = vmatpush1.bf16.msra.mxu0 0
        %806 = vmatprep.subr.bf16.mxu0 0
        %807 = vmatpush1.bf16.msra.mxu0 0
        %808 = vmatprep.subr.bf16.mxu0 0
        %809 = vmatpush1.bf16.msra.mxu0 0
        %810 = vmatprep.subr.bf16.mxu0 0
        %811 = vmatpush1.bf16.msra.mxu0 0
        %812 = vmatprep.subr.bf16.mxu0 0
        %813 = vmatpush1.bf16.msra.mxu0 0
        %814 = vmatprep.subr.bf16.mxu0 0
        %815 = vmatpush1.bf16.msra.mxu0 0
        %816 = vmatprep.subr.bf16.mxu0 0
        %817 = vmatpush1.bf16.msra.mxu0 0
        %818 = vmatprep.subr.bf16.mxu0 0
        %819 = vmatpush1.bf16.msra.mxu0 0
        %820 = vmatprep.subr.bf16.mxu0 0
        %821 = vmatpush1.bf16.msra.mxu0 0
        %822 = vmatprep.subr.bf16.mxu0 0
        %823 = vmatpush1.bf16.msra.mxu0 0
        %824 = vmatprep.mubr.bf16.mxu0 0
        %825 = vmatmul.mubr.bf16.gmra.mrb[0].mxu0 %v747
        %v826 = vpop.f32.mrb[0].mxu0
        %v827 = vadd.f32 0.0, %v826
        %v828 = vpop.f32.mrb[0].mxu0
        %v829 = vadd.f32 0.0, %v828
        %v830 = vpop.f32.mrb[0].mxu0
        %v831 = vadd.f32 0.0, %v830
        %v832 = vpop.f32.mrb[0].mxu0
        %v833 = vadd.f32 0.0, %v832
        %834 = vdwg.mxu0
        %835 = vmatprep.subr.bf16.mxu0 %v692
        %836 = vmatpush1.bf16.msra.mxu0 %v691
        %837 = vmatprep.subr.bf16.mxu0 %v708
        %838 = vmatpush1.bf16.msra.mxu0 %v707
        %839 = vmatprep.subr.bf16.mxu0 %v724
        %840 = vmatpush1.bf16.msra.mxu0 %v723
        %841 = vmatprep.subr.bf16.mxu0 0
        %842 = vmatpush1.bf16.msra.mxu0 0
        %843 = vmatprep.subr.bf16.mxu0 0
        %844 = vmatpush1.bf16.msra.mxu0 0
        %845 = vmatprep.subr.bf16.mxu0 0
        %846 = vmatpush1.bf16.msra.mxu0 0
        %847 = vmatprep.subr.bf16.mxu0 0
        %848 = vmatpush1.bf16.msra.mxu0 0
        %849 = vmatprep.subr.bf16.mxu0 0
        %850 = vmatpush1.bf16.msra.mxu0 0
        %851 = vmatprep.subr.bf16.mxu0 0
        %852 = vmatpush1.bf16.msra.mxu0 0
        %853 = vmatprep.subr.bf16.mxu0 0
        %854 = vmatpush1.bf16.msra.mxu0 0
        %855 = vmatprep.subr.bf16.mxu0 0
        %856 = vmatpush1.bf16.msra.mxu0 0
        %857 = vmatprep.subr.bf16.mxu0 0
        %858 = vmatpush1.bf16.msra.mxu0 0
        %859 = vmatprep.subr.bf16.mxu0 0
        %860 = vmatpush1.bf16.msra.mxu0 0
        %861 = vmatprep.subr.bf16.mxu0 0
        %862 = vmatpush1.bf16.msra.mxu0 0
        %863 = vmatprep.subr.bf16.mxu0 0
        %864 = vmatpush1.bf16.msra.mxu0 0
        %865 = vmatprep.subr.bf16.mxu0 0
        %866 = vmatpush1.bf16.msra.mxu0 0
        %867 = vmatprep.mubr.bf16.mxu0 0
        %868 = vmatmul.mubr.bf16.gmra.mrb[0].mxu0 %v747
        %v869 = vpop.f32.mrb[0].mxu0
        %v870 = vadd.f32 0.0, %v869
        %v871 = vpop.f32.mrb[0].mxu0
        %v872 = vadd.f32 0.0, %v871
        %v873 = vpop.f32.mrb[0].mxu0
        %v874 = vadd.f32 0.0, %v873
        %v875 = vpop.f32.mrb[0].mxu0
        %v876 = vadd.f32 0.0, %v875
        %877 = vdwg.mxu0
        %878 = vmatprep.subr.bf16.mxu0 %v694
        %879 = vmatpush1.bf16.msra.mxu0 %v693
        %880 = vmatprep.subr.bf16.mxu0 %v710
        %881 = vmatpush1.bf16.msra.mxu0 %v709
        %882 = vmatprep.subr.bf16.mxu0 %v726
        %883 = vmatpush1.bf16.msra.mxu0 %v725
        %884 = vmatprep.subr.bf16.mxu0 0
        %885 = vmatpush1.bf16.msra.mxu0 0
        %886 = vmatprep.subr.bf16.mxu0 0
        %887 = vmatpush1.bf16.msra.mxu0 0
        %888 = vmatprep.subr.bf16.mxu0 0
        %889 = vmatpush1.bf16.msra.mxu0 0
        %890 = vmatprep.subr.bf16.mxu0 0
        %891 = vmatpush1.bf16.msra.mxu0 0
        %892 = vmatprep.subr.bf16.mxu0 0
        %893 = vmatpush1.bf16.msra.mxu0 0
        %894 = vmatprep.subr.bf16.mxu0 0
        %895 = vmatpush1.bf16.msra.mxu0 0
        %896 = vmatprep.subr.bf16.mxu0 0
        %897 = vmatpush1.bf16.msra.mxu0 0
        %898 = vmatprep.subr.bf16.mxu0 0
        %899 = vmatpush1.bf16.msra.mxu0 0
        %900 = vmatprep.subr.bf16.mxu0 0
        %901 = vmatpush1.bf16.msra.mxu0 0
        %902 = vmatprep.subr.bf16.mxu0 0
        %903 = vmatpush1.bf16.msra.mxu0 0
        %904 = vmatprep.subr.bf16.mxu0 0
        %905 = vmatpush1.bf16.msra.mxu0 0
        %906 = vmatprep.subr.bf16.mxu0 0
        %907 = vmatpush1.bf16.msra.mxu0 0
        %908 = vmatprep.subr.bf16.mxu0 0
        %909 = vmatpush1.bf16.msra.mxu0 0
        %910 = vmatprep.mubr.bf16.mxu0 0
        %911 = vmatmul.mubr.bf16.gmra.mrb[0].mxu0 %v747
        %v912 = vpop.f32.mrb[0].mxu0
        %v913 = vadd.f32 0.0, %v912
        %v914 = vpop.f32.mrb[0].mxu0
        %v915 = vadd.f32 0.0, %v914
        %v916 = vpop.f32.mrb[0].mxu0
        %v917 = vadd.f32 0.0, %v916
        %v918 = vpop.f32.mrb[0].mxu0
        %v919 = vadd.f32 0.0, %v918
        %920 = vdwg.mxu0
        %921 = vmatprep.subr.bf16.mxu0 %v696
        %922 = vmatpush1.bf16.msra.mxu0 %v695
        %923 = vmatprep.subr.bf16.mxu0 %v712
        %924 = vmatpush1.bf16.msra.mxu0 %v711
        %925 = vmatprep.subr.bf16.mxu0 %v728
        %926 = vmatpush1.bf16.msra.mxu0 %v727
        %927 = vmatprep.subr.bf16.mxu0 0
        %928 = vmatpush1.bf16.msra.mxu0 0
        %929 = vmatprep.subr.bf16.mxu0 0
        %930 = vmatpush1.bf16.msra.mxu0 0
        %931 = vmatprep.subr.bf16.mxu0 0
        %932 = vmatpush1.bf16.msra.mxu0 0
        %933 = vmatprep.subr.bf16.mxu0 0
        %934 = vmatpush1.bf16.msra.mxu0 0
        %935 = vmatprep.subr.bf16.mxu0 0
        %936 = vmatpush1.bf16.msra.mxu0 0
        %937 = vmatprep.subr.bf16.mxu0 0
        %938 = vmatpush1.bf16.msra.mxu0 0
        %939 = vmatprep.subr.bf16.mxu0 0
        %940 = vmatpush1.bf16.msra.mxu0 0
        %941 = vmatprep.subr.bf16.mxu0 0
        %942 = vmatpush1.bf16.msra.mxu0 0
        %943 = vmatprep.subr.bf16.mxu0 0
        %944 = vmatpush1.bf16.msra.mxu0 0
        %945 = vmatprep.subr.bf16.mxu0 0
        %946 = vmatpush1.bf16.msra.mxu0 0
        %947 = vmatprep.subr.bf16.mxu0 0
        %948 = vmatpush1.bf16.msra.mxu0 0
        %949 = vmatprep.subr.bf16.mxu0 0
        %950 = vmatpush1.bf16.msra.mxu0 0
        %951 = vmatprep.subr.bf16.mxu0 0
        %952 = vmatpush1.bf16.msra.mxu0 0
        %953 = vmatprep.mubr.bf16.mxu0 0
        %954 = vmatmul.mubr.bf16.gmra.mrb[0].mxu0 %v747
        %v955 = vpop.f32.mrb[0].mxu0
        %v956 = vadd.f32 0.0, %v955
        %v957 = vpop.f32.mrb[0].mxu0
        %v958 = vadd.f32 0.0, %v957
        %v959 = vpop.f32.mrb[0].mxu0
        %v960 = vadd.f32 0.0, %v959
        %v961 = vpop.f32.mrb[0].mxu0
        %v962 = vadd.f32 0.0, %v961
        %963 = vdwg.mxu0
        %964 = vmatprep.subr.bf16.mxu0 %v698
        %965 = vmatpush1.bf16.msra.mxu0 %v697
        %966 = vmatprep.subr.bf16.mxu0 %v714
        %967 = vmatpush1.bf16.msra.mxu0 %v713
        %968 = vmatprep.subr.bf16.mxu0 %v730
        %969 = vmatpush1.bf16.msra.mxu0 %v729
        %970 = vmatprep.subr.bf16.mxu0 0
        %971 = vmatpush1.bf16.msra.mxu0 0
        %972 = vmatprep.subr.bf16.mxu0 0
        %973 = vmatpush1.bf16.msra.mxu0 0
        %974 = vmatprep.subr.bf16.mxu0 0
        %975 = vmatpush1.bf16.msra.mxu0 0
        %976 = vmatprep.subr.bf16.mxu0 0
        %977 = vmatpush1.bf16.msra.mxu0 0
        %978 = vmatprep.subr.bf16.mxu0 0
        %979 = vmatpush1.bf16.msra.mxu0 0
        %980 = vmatprep.subr.bf16.mxu0 0
        %981 = vmatpush1.bf16.msra.mxu0 0
        %982 = vmatprep.subr.bf16.mxu0 0
        %983 = vmatpush1.bf16.msra.mxu0 0
        %984 = vmatprep.subr.bf16.mxu0 0
        %985 = vmatpush1.bf16.msra.mxu0 0
        %986 = vmatprep.subr.bf16.mxu0 0
        %987 = vmatpush1.bf16.msra.mxu0 0
        %988 = vmatprep.subr.bf16.mxu0 0
        %989 = vmatpush1.bf16.msra.mxu0 0
        %990 = vmatprep.subr.bf16.mxu0 0
        %991 = vmatpush1.bf16.msra.mxu0 0
        %992 = vmatprep.subr.bf16.mxu0 0
        %993 = vmatpush1.bf16.msra.mxu0 0
        %994 = vmatprep.subr.bf16.mxu0 0
        %995 = vmatpush1.bf16.msra.mxu0 0
        %996 = vmatprep.mubr.bf16.mxu0 0
        %997 = vmatmul.mubr.bf16.gmra.mrb[0].mxu0 %v747
        %v998 = vpop.f32.mrb[0].mxu0
        %v999 = vadd.f32 0.0, %v998
        %v1000 = vpop.f32.mrb[0].mxu0
        %v1001 = vadd.f32 0.0, %v1000
        %v1002 = vpop.f32.mrb[0].mxu0
        %v1003 = vadd.f32 0.0, %v1002
        %v1004 = vpop.f32.mrb[0].mxu0
        %v1005 = vadd.f32 0.0, %v1004
        %1006 = vdwg.mxu0
        %1007 = vmatprep.subr.bf16.mxu0 %v700
        %1008 = vmatpush1.bf16.msra.mxu0 %v699
        %1009 = vmatprep.subr.bf16.mxu0 %v716
        %1010 = vmatpush1.bf16.msra.mxu0 %v715
        %1011 = vmatprep.subr.bf16.mxu0 %v732
        %1012 = vmatpush1.bf16.msra.mxu0 %v731
        %1013 = vmatprep.subr.bf16.mxu0 0
        %1014 = vmatpush1.bf16.msra.mxu0 0
        %1015 = vmatprep.subr.bf16.mxu0 0
        %1016 = vmatpush1.bf16.msra.mxu0 0
        %1017 = vmatprep.subr.bf16.mxu0 0
        %1018 = vmatpush1.bf16.msra.mxu0 0
        %1019 = vmatprep.subr.bf16.mxu0 0
        %1020 = vmatpush1.bf16.msra.mxu0 0
        %1021 = vmatprep.subr.bf16.mxu0 0
        %1022 = vmatpush1.bf16.msra.mxu0 0
        %1023 = vmatprep.subr.bf16.mxu0 0
        %1024 = vmatpush1.bf16.msra.mxu0 0
        %1025 = vmatprep.subr.bf16.mxu0 0
        %1026 = vmatpush1.bf16.msra.mxu0 0
        %1027 = vmatprep.subr.bf16.mxu0 0
        %1028 = vmatpush1.bf16.msra.mxu0 0
        %1029 = vmatprep.subr.bf16.mxu0 0
        %1030 = vmatpush1.bf16.msra.mxu0 0
        %1031 = vmatprep.subr.bf16.mxu0 0
        %1032 = vmatpush1.bf16.msra.mxu0 0
        %1033 = vmatprep.subr.bf16.mxu0 0
        %1034 = vmatpush1.bf16.msra.mxu0 0
        %1035 = vmatprep.subr.bf16.mxu0 0
        %1036 = vmatpush1.bf16.msra.mxu0 0
        %1037 = vmatprep.subr.bf16.mxu0 0
        %1038 = vmatpush1.bf16.msra.mxu0 0
        %1039 = vmatprep.mubr.bf16.mxu0 0
        %1040 = vmatmul.mubr.bf16.gmra.mrb[0].mxu0 %v747
        %v1041 = vpop.f32.mrb[0].mxu0
        %v1042 = vadd.f32 0.0, %v1041
        %v1043 = vpop.f32.mrb[0].mxu0
        %v1044 = vadd.f32 0.0, %v1043
        %v1045 = vpop.f32.mrb[0].mxu0
        %v1046 = vadd.f32 0.0, %v1045
        %v1047 = vpop.f32.mrb[0].mxu0
        %v1048 = vadd.f32 0.0, %v1047
        %1049 = vdwg.mxu0
        %1050 = vmatprep.subr.bf16.mxu0 %v737
        %1051 = vmatpush1.bf16.msra.mxu0 %v701
        %1052 = vmatprep.subr.bf16.mxu0 %v738
        %1053 = vmatpush1.bf16.msra.mxu0 %v717
        %1054 = vmatprep.subr.bf16.mxu0 %v739
        %1055 = vmatpush1.bf16.msra.mxu0 %v733
        %1056 = vmatprep.subr.bf16.mxu0 0
        %1057 = vmatpush1.bf16.msra.mxu0 0
        %1058 = vmatprep.subr.bf16.mxu0 0
        %1059 = vmatpush1.bf16.msra.mxu0 0
        %1060 = vmatprep.subr.bf16.mxu0 0
        %1061 = vmatpush1.bf16.msra.mxu0 0
        %1062 = vmatprep.subr.bf16.mxu0 0
        %1063 = vmatpush1.bf16.msra.mxu0 0
        %1064 = vmatprep.subr.bf16.mxu0 0
        %1065 = vmatpush1.bf16.msra.mxu0 0
        %1066 = vmatprep.subr.bf16.mxu0 0
        %1067 = vmatpush1.bf16.msra.mxu0 0
        %1068 = vmatprep.subr.bf16.mxu0 0
        %1069 = vmatpush1.bf16.msra.mxu0 0
        %1070 = vmatprep.subr.bf16.mxu0 0
        %1071 = vmatpush1.bf16.msra.mxu0 0
        %1072 = vmatprep.subr.bf16.mxu0 0
        %1073 = vmatpush1.bf16.msra.mxu0 0
        %1074 = vmatprep.subr.bf16.mxu0 0
        %1075 = vmatpush1.bf16.msra.mxu0 0
        %1076 = vmatprep.subr.bf16.mxu0 0
        %1077 = vmatpush1.bf16.msra.mxu0 0
        %1078 = vmatprep.subr.bf16.mxu0 0
        %1079 = vmatpush1.bf16.msra.mxu0 0
        %1080 = vmatprep.subr.bf16.mxu0 0
        %1081 = vmatpush1.bf16.msra.mxu0 0
        %1082 = vmatprep.mubr.bf16.mxu0 0
        %1083 = vmatmul.mubr.bf16.gmra.mrb[0].mxu0 %v747
        %v1084 = vpop.f32.mrb[0].mxu0
        %v1085 = vadd.f32 0.0, %v1084
        %v1086 = vpop.f32.mrb[0].mxu0
        %v1087 = vadd.f32 0.0, %v1086
        %v1088 = vpop.f32.mrb[0].mxu0
        %v1089 = vadd.f32 0.0, %v1088
        %v1090 = vpop.f32.mrb[0].mxu0
        %v1091 = vadd.f32 0.0, %v1090
        %1092 = vdwg.mxu0
        %v1095 = vunpack.c.l.b16 %v684
        %v1096 = vunpack.c.l.b16 %v685
        %v1097 = vpack.c.b16 %v1096, %v1095
        %v1099 = vsel %vm745, %v1097, 0
        %1101 = vmatprep.subr.bf16.mxu0 %v687
        %1102 = vmatpush1.bf16.msra.mxu0 %v686
        %1103 = vmatprep.subr.bf16.mxu0 %v703
        %1104 = vmatpush1.bf16.msra.mxu0 %v702
        %1105 = vmatprep.subr.bf16.mxu0 %v719
        %1106 = vmatpush1.bf16.msra.mxu0 %v718
        %1107 = vmatprep.subr.bf16.mxu0 0
        %1108 = vmatpush1.bf16.msra.mxu0 0
        %1109 = vmatprep.subr.bf16.mxu0 0
        %1110 = vmatpush1.bf16.msra.mxu0 0
        %1111 = vmatprep.subr.bf16.mxu0 0
        %1112 = vmatpush1.bf16.msra.mxu0 0
        %1113 = vmatprep.subr.bf16.mxu0 0
        %1114 = vmatpush1.bf16.msra.mxu0 0
        %1115 = vmatprep.subr.bf16.mxu0 0
        %1116 = vmatpush1.bf16.msra.mxu0 0
        %1117 = vmatprep.subr.bf16.mxu0 0
        %1118 = vmatpush1.bf16.msra.mxu0 0
        %1119 = vmatprep.subr.bf16.mxu0 0
        %1120 = vmatpush1.bf16.msra.mxu0 0
        %1121 = vmatprep.subr.bf16.mxu0 0
        %1122 = vmatpush1.bf16.msra.mxu0 0
        %1123 = vmatprep.subr.bf16.mxu0 0
        %1124 = vmatpush1.bf16.msra.mxu0 0
        %1125 = vmatprep.subr.bf16.mxu0 0
        %1126 = vmatpush1.bf16.msra.mxu0 0
        %1127 = vmatprep.subr.bf16.mxu0 0
        %1128 = vmatpush1.bf16.msra.mxu0 0
        %1129 = vmatprep.subr.bf16.mxu0 0
        %1130 = vmatpush1.bf16.msra.mxu0 0
        %1131 = vmatprep.subr.bf16.mxu0 0
        %1132 = vmatpush1.bf16.msra.mxu0 0
        %1133 = vmatprep.mubr.bf16.mxu0 0
        %1134 = vmatmul.mubr.bf16.gmra.mrb[0].mxu0 %v1099
        %v1135 = vpop.f32.mrb[0].mxu0
        %v1136 = vadd.f32 %v784, %v1135
        %v1137 = vpop.f32.mrb[0].mxu0
        %v1138 = vadd.f32 %v786, %v1137
        %v1139 = vpop.f32.mrb[0].mxu0
        %v1140 = vadd.f32 %v788, %v1139
        %v1141 = vpop.f32.mrb[0].mxu0
        %v1142 = vadd.f32 %v790, %v1141
        %1143 = vdwg.mxu0
        %1144 = vmatprep.subr.bf16.mxu0 %v689
        %1145 = vmatpush1.bf16.msra.mxu0 %v688
        %1146 = vmatprep.subr.bf16.mxu0 %v705
        %1147 = vmatpush1.bf16.msra.mxu0 %v704
        %1148 = vmatprep.subr.bf16.mxu0 %v721
        %1149 = vmatpush1.bf16.msra.mxu0 %v720
        %1150 = vmatprep.subr.bf16.mxu0 0
        %1151 = vmatpush1.bf16.msra.mxu0 0
        %1152 = vmatprep.subr.bf16.mxu0 0
        %1153 = vmatpush1.bf16.msra.mxu0 0
        %1154 = vmatprep.subr.bf16.mxu0 0
        %1155 = vmatpush1.bf16.msra.mxu0 0
        %1156 = vmatprep.subr.bf16.mxu0 0
        %1157 = vmatpush1.bf16.msra.mxu0 0
        %1158 = vmatprep.subr.bf16.mxu0 0
        %1159 = vmatpush1.bf16.msra.mxu0 0
        %1160 = vmatprep.subr.bf16.mxu0 0
        %1161 = vmatpush1.bf16.msra.mxu0 0
        %1162 = vmatprep.subr.bf16.mxu0 0
        %1163 = vmatpush1.bf16.msra.mxu0 0
        %1164 = vmatprep.subr.bf16.mxu0 0
        %1165 = vmatpush1.bf16.msra.mxu0 0
        %1166 = vmatprep.subr.bf16.mxu0 0
        %1167 = vmatpush1.bf16.msra.mxu0 0
        %1168 = vmatprep.subr.bf16.mxu0 0
        %1169 = vmatpush1.bf16.msra.mxu0 0
        %1170 = vmatprep.subr.bf16.mxu0 0
        %1171 = vmatpush1.bf16.msra.mxu0 0
        %1172 = vmatprep.subr.bf16.mxu0 0
        %1173 = vmatpush1.bf16.msra.mxu0 0
        %1174 = vmatprep.subr.bf16.mxu0 0
        %1175 = vmatpush1.bf16.msra.mxu0 0
        %1176 = vmatprep.mubr.bf16.mxu0 0
        %1177 = vmatmul.mubr.bf16.gmra.mrb[0].mxu0 %v1099
        %v1178 = vpop.f32.mrb[0].mxu0
        %v1179 = vadd.f32 %v827, %v1178
        %v1180 = vpop.f32.mrb[0].mxu0
        %v1181 = vadd.f32 %v829, %v1180
        %v1182 = vpop.f32.mrb[0].mxu0
        %v1183 = vadd.f32 %v831, %v1182
        %v1184 = vpop.f32.mrb[0].mxu0
        %v1185 = vadd.f32 %v833, %v1184
        %1186 = vdwg.mxu0
        %1187 = vmatprep.subr.bf16.mxu0 %v691
        %1188 = vmatpush1.bf16.msra.mxu0 %v690
        %1189 = vmatprep.subr.bf16.mxu0 %v707
        %1190 = vmatpush1.bf16.msra.mxu0 %v706
        %1191 = vmatprep.subr.bf16.mxu0 %v723
        %1192 = vmatpush1.bf16.msra.mxu0 %v722
        %1193 = vmatprep.subr.bf16.mxu0 0
        %1194 = vmatpush1.bf16.msra.mxu0 0
        %1195 = vmatprep.subr.bf16.mxu0 0
        %1196 = vmatpush1.bf16.msra.mxu0 0
        %1197 = vmatprep.subr.bf16.mxu0 0
        %1198 = vmatpush1.bf16.msra.mxu0 0
        %1199 = vmatprep.subr.bf16.mxu0 0
        %1200 = vmatpush1.bf16.msra.mxu0 0
        %1201 = vmatprep.subr.bf16.mxu0 0
        %1202 = vmatpush1.bf16.msra.mxu0 0
        %1203 = vmatprep.subr.bf16.mxu0 0
        %1204 = vmatpush1.bf16.msra.mxu0 0
        %1205 = vmatprep.subr.bf16.mxu0 0
        %1206 = vmatpush1.bf16.msra.mxu0 0
        %1207 = vmatprep.subr.bf16.mxu0 0
        %1208 = vmatpush1.bf16.msra.mxu0 0
        %1209 = vmatprep.subr.bf16.mxu0 0
        %1210 = vmatpush1.bf16.msra.mxu0 0
        %1211 = vmatprep.subr.bf16.mxu0 0
        %1212 = vmatpush1.bf16.msra.mxu0 0
        %1213 = vmatprep.subr.bf16.mxu0 0
        %1214 = vmatpush1.bf16.msra.mxu0 0
        %1215 = vmatprep.subr.bf16.mxu0 0
        %1216 = vmatpush1.bf16.msra.mxu0 0
        %1217 = vmatprep.subr.bf16.mxu0 0
        %1218 = vmatpush1.bf16.msra.mxu0 0
        %1219 = vmatprep.mubr.bf16.mxu0 0
        %1220 = vmatmul.mubr.bf16.gmra.mrb[0].mxu0 %v1099
        %v1221 = vpop.f32.mrb[0].mxu0
        %v1222 = vadd.f32 %v870, %v1221
        %v1223 = vpop.f32.mrb[0].mxu0
        %v1224 = vadd.f32 %v872, %v1223
        %v1225 = vpop.f32.mrb[0].mxu0
        %v1226 = vadd.f32 %v874, %v1225
        %v1227 = vpop.f32.mrb[0].mxu0
        %v1228 = vadd.f32 %v876, %v1227
        %1229 = vdwg.mxu0
        %1230 = vmatprep.subr.bf16.mxu0 %v693
        %1231 = vmatpush1.bf16.msra.mxu0 %v692
        %1232 = vmatprep.subr.bf16.mxu0 %v709
        %1233 = vmatpush1.bf16.msra.mxu0 %v708
        %1234 = vmatprep.subr.bf16.mxu0 %v725
        %1235 = vmatpush1.bf16.msra.mxu0 %v724
        %1236 = vmatprep.subr.bf16.mxu0 0
        %1237 = vmatpush1.bf16.msra.mxu0 0
        %1238 = vmatprep.subr.bf16.mxu0 0
        %1239 = vmatpush1.bf16.msra.mxu0 0
        %1240 = vmatprep.subr.bf16.mxu0 0
        %1241 = vmatpush1.bf16.msra.mxu0 0
        %1242 = vmatprep.subr.bf16.mxu0 0
        %1243 = vmatpush1.bf16.msra.mxu0 0
        %1244 = vmatprep.subr.bf16.mxu0 0
        %1245 = vmatpush1.bf16.msra.mxu0 0
        %1246 = vmatprep.subr.bf16.mxu0 0
        %1247 = vmatpush1.bf16.msra.mxu0 0
        %1248 = vmatprep.subr.bf16.mxu0 0
        %1249 = vmatpush1.bf16.msra.mxu0 0
        %1250 = vmatprep.subr.bf16.mxu0 0
        %1251 = vmatpush1.bf16.msra.mxu0 0
        %1252 = vmatprep.subr.bf16.mxu0 0
        %1253 = vmatpush1.bf16.msra.mxu0 0
        %1254 = vmatprep.subr.bf16.mxu0 0
        %1255 = vmatpush1.bf16.msra.mxu0 0
        %1256 = vmatprep.subr.bf16.mxu0 0
        %1257 = vmatpush1.bf16.msra.mxu0 0
        %1258 = vmatprep.subr.bf16.mxu0 0
        %1259 = vmatpush1.bf16.msra.mxu0 0
        %1260 = vmatprep.subr.bf16.mxu0 0
        %1261 = vmatpush1.bf16.msra.mxu0 0
        %1262 = vmatprep.mubr.bf16.mxu0 0
        %1263 = vmatmul.mubr.bf16.gmra.mrb[0].mxu0 %v1099
        %v1264 = vpop.f32.mrb[0].mxu0
        %v1265 = vadd.f32 %v913, %v1264
        %v1266 = vpop.f32.mrb[0].mxu0
        %v1267 = vadd.f32 %v915, %v1266
        %v1268 = vpop.f32.mrb[0].mxu0
        %v1269 = vadd.f32 %v917, %v1268
        %v1270 = vpop.f32.mrb[0].mxu0
        %v1271 = vadd.f32 %v919, %v1270
        %1272 = vdwg.mxu0
        %1273 = vmatprep.subr.bf16.mxu0 %v695
        %1274 = vmatpush1.bf16.msra.mxu0 %v694
        %1275 = vmatprep.subr.bf16.mxu0 %v711
        %1276 = vmatpush1.bf16.msra.mxu0 %v710
        %1277 = vmatprep.subr.bf16.mxu0 %v727
        %1278 = vmatpush1.bf16.msra.mxu0 %v726
        %1279 = vmatprep.subr.bf16.mxu0 0
        %1280 = vmatpush1.bf16.msra.mxu0 0
        %1281 = vmatprep.subr.bf16.mxu0 0
        %1282 = vmatpush1.bf16.msra.mxu0 0
        %1283 = vmatprep.subr.bf16.mxu0 0
        %1284 = vmatpush1.bf16.msra.mxu0 0
        %1285 = vmatprep.subr.bf16.mxu0 0
        %1286 = vmatpush1.bf16.msra.mxu0 0
        %1287 = vmatprep.subr.bf16.mxu0 0
        %1288 = vmatpush1.bf16.msra.mxu0 0
        %1289 = vmatprep.subr.bf16.mxu0 0
        %1290 = vmatpush1.bf16.msra.mxu0 0
        %1291 = vmatprep.subr.bf16.mxu0 0
        %1292 = vmatpush1.bf16.msra.mxu0 0
        %1293 = vmatprep.subr.bf16.mxu0 0
        %1294 = vmatpush1.bf16.msra.mxu0 0
        %1295 = vmatprep.subr.bf16.mxu0 0
        %1296 = vmatpush1.bf16.msra.mxu0 0
        %1297 = vmatprep.subr.bf16.mxu0 0
        %1298 = vmatpush1.bf16.msra.mxu0 0
        %1299 = vmatprep.subr.bf16.mxu0 0
        %1300 = vmatpush1.bf16.msra.mxu0 0
        %1301 = vmatprep.subr.bf16.mxu0 0
        %1302 = vmatpush1.bf16.msra.mxu0 0
        %1303 = vmatprep.subr.bf16.mxu0 0
        %1304 = vmatpush1.bf16.msra.mxu0 0
        %1305 = vmatprep.mubr.bf16.mxu0 0
        %1306 = vmatmul.mubr.bf16.gmra.mrb[0].mxu0 %v1099
        %v1307 = vpop.f32.mrb[0].mxu0
        %v1308 = vadd.f32 %v956, %v1307
        %v1309 = vpop.f32.mrb[0].mxu0
        %v1310 = vadd.f32 %v958, %v1309
        %v1311 = vpop.f32.mrb[0].mxu0
        %v1312 = vadd.f32 %v960, %v1311
        %v1313 = vpop.f32.mrb[0].mxu0
        %v1314 = vadd.f32 %v962, %v1313
        %1315 = vdwg.mxu0
        %1316 = vmatprep.subr.bf16.mxu0 %v697
        %1317 = vmatpush1.bf16.msra.mxu0 %v696
        %1318 = vmatprep.subr.bf16.mxu0 %v713
        %1319 = vmatpush1.bf16.msra.mxu0 %v712
        %1320 = vmatprep.subr.bf16.mxu0 %v729
        %1321 = vmatpush1.bf16.msra.mxu0 %v728
        %1322 = vmatprep.subr.bf16.mxu0 0
        %1323 = vmatpush1.bf16.msra.mxu0 0
        %1324 = vmatprep.subr.bf16.mxu0 0
        %1325 = vmatpush1.bf16.msra.mxu0 0
        %1326 = vmatprep.subr.bf16.mxu0 0
        %1327 = vmatpush1.bf16.msra.mxu0 0
        %1328 = vmatprep.subr.bf16.mxu0 0
        %1329 = vmatpush1.bf16.msra.mxu0 0
        %1330 = vmatprep.subr.bf16.mxu0 0
        %1331 = vmatpush1.bf16.msra.mxu0 0
        %1332 = vmatprep.subr.bf16.mxu0 0
        %1333 = vmatpush1.bf16.msra.mxu0 0
        %1334 = vmatprep.subr.bf16.mxu0 0
        %1335 = vmatpush1.bf16.msra.mxu0 0
        %1336 = vmatprep.subr.bf16.mxu0 0
        %1337 = vmatpush1.bf16.msra.mxu0 0
        %1338 = vmatprep.subr.bf16.mxu0 0
        %1339 = vmatpush1.bf16.msra.mxu0 0
        %1340 = vmatprep.subr.bf16.mxu0 0
        %1341 = vmatpush1.bf16.msra.mxu0 0
        %1342 = vmatprep.subr.bf16.mxu0 0
        %1343 = vmatpush1.bf16.msra.mxu0 0
        %1344 = vmatprep.subr.bf16.mxu0 0
        %1345 = vmatpush1.bf16.msra.mxu0 0
        %1346 = vmatprep.subr.bf16.mxu0 0
        %1347 = vmatpush1.bf16.msra.mxu0 0
        %1348 = vmatprep.mubr.bf16.mxu0 0
        %1349 = vmatmul.mubr.bf16.gmra.mrb[0].mxu0 %v1099
        %v1350 = vpop.f32.mrb[0].mxu0
        %v1351 = vadd.f32 %v999, %v1350
        %v1352 = vpop.f32.mrb[0].mxu0
        %v1353 = vadd.f32 %v1001, %v1352
        %v1354 = vpop.f32.mrb[0].mxu0
        %v1355 = vadd.f32 %v1003, %v1354
        %v1356 = vpop.f32.mrb[0].mxu0
        %v1357 = vadd.f32 %v1005, %v1356
        %1358 = vdwg.mxu0
        %1359 = vmatprep.subr.bf16.mxu0 %v699
        %1360 = vmatpush1.bf16.msra.mxu0 %v698
        %1361 = vmatprep.subr.bf16.mxu0 %v715
        %1362 = vmatpush1.bf16.msra.mxu0 %v714
        %1363 = vmatprep.subr.bf16.mxu0 %v731
        %1364 = vmatpush1.bf16.msra.mxu0 %v730
        %1365 = vmatprep.subr.bf16.mxu0 0
        %1366 = vmatpush1.bf16.msra.mxu0 0
        %1367 = vmatprep.subr.bf16.mxu0 0
        %1368 = vmatpush1.bf16.msra.mxu0 0
        %1369 = vmatprep.subr.bf16.mxu0 0
        %1370 = vmatpush1.bf16.msra.mxu0 0
        %1371 = vmatprep.subr.bf16.mxu0 0
        %1372 = vmatpush1.bf16.msra.mxu0 0
        %1373 = vmatprep.subr.bf16.mxu0 0
        %1374 = vmatpush1.bf16.msra.mxu0 0
        %1375 = vmatprep.subr.bf16.mxu0 0
        %1376 = vmatpush1.bf16.msra.mxu0 0
        %1377 = vmatprep.subr.bf16.mxu0 0
        %1378 = vmatpush1.bf16.msra.mxu0 0
        %1379 = vmatprep.subr.bf16.mxu0 0
        %1380 = vmatpush1.bf16.msra.mxu0 0
        %1381 = vmatprep.subr.bf16.mxu0 0
        %1382 = vmatpush1.bf16.msra.mxu0 0
        %1383 = vmatprep.subr.bf16.mxu0 0
        %1384 = vmatpush1.bf16.msra.mxu0 0
        %1385 = vmatprep.subr.bf16.mxu0 0
        %1386 = vmatpush1.bf16.msra.mxu0 0
        %1387 = vmatprep.subr.bf16.mxu0 0
        %1388 = vmatpush1.bf16.msra.mxu0 0
        %1389 = vmatprep.subr.bf16.mxu0 0
        %1390 = vmatpush1.bf16.msra.mxu0 0
        %1391 = vmatprep.mubr.bf16.mxu0 0
        %1392 = vmatmul.mubr.bf16.gmra.mrb[0].mxu0 %v1099
        %v1393 = vpop.f32.mrb[0].mxu0
        %v1394 = vadd.f32 %v1042, %v1393
        %v1395 = vpop.f32.mrb[0].mxu0
        %v1396 = vadd.f32 %v1044, %v1395
        %v1397 = vpop.f32.mrb[0].mxu0
        %v1398 = vadd.f32 %v1046, %v1397
        %v1399 = vpop.f32.mrb[0].mxu0
        %v1400 = vadd.f32 %v1048, %v1399
        %1401 = vdwg.mxu0
        %1402 = vmatprep.subr.bf16.mxu0 %v701
        %1403 = vmatpush1.bf16.msra.mxu0 %v700
        %1404 = vmatprep.subr.bf16.mxu0 %v717
        %1405 = vmatpush1.bf16.msra.mxu0 %v716
        %1406 = vmatprep.subr.bf16.mxu0 %v733
        %1407 = vmatpush1.bf16.msra.mxu0 %v732
        %1408 = vmatprep.subr.bf16.mxu0 0
        %1409 = vmatpush1.bf16.msra.mxu0 0
        %1410 = vmatprep.subr.bf16.mxu0 0
        %1411 = vmatpush1.bf16.msra.mxu0 0
        %1412 = vmatprep.subr.bf16.mxu0 0
        %1413 = vmatpush1.bf16.msra.mxu0 0
        %1414 = vmatprep.subr.bf16.mxu0 0
        %1415 = vmatpush1.bf16.msra.mxu0 0
        %1416 = vmatprep.subr.bf16.mxu0 0
        %1417 = vmatpush1.bf16.msra.mxu0 0
        %1418 = vmatprep.subr.bf16.mxu0 0
        %1419 = vmatpush1.bf16.msra.mxu0 0
        %1420 = vmatprep.subr.bf16.mxu0 0
        %1421 = vmatpush1.bf16.msra.mxu0 0
        %1422 = vmatprep.subr.bf16.mxu0 0
        %1423 = vmatpush1.bf16.msra.mxu0 0
        %1424 = vmatprep.subr.bf16.mxu0 0
        %1425 = vmatpush1.bf16.msra.mxu0 0
        %1426 = vmatprep.subr.bf16.mxu0 0
        %1427 = vmatpush1.bf16.msra.mxu0 0
        %1428 = vmatprep.subr.bf16.mxu0 0
        %1429 = vmatpush1.bf16.msra.mxu0 0
        %1430 = vmatprep.subr.bf16.mxu0 0
        %1431 = vmatpush1.bf16.msra.mxu0 0
        %1432 = vmatprep.subr.bf16.mxu0 0
        %1433 = vmatpush1.bf16.msra.mxu0 0
        %1434 = vmatprep.mubr.bf16.mxu0 0
        %1435 = vmatmul.mubr.bf16.gmra.mrb[0].mxu0 %v1099
        %v1436 = vpop.f32.mrb[0].mxu0
        %v1437 = vadd.f32 %v1085, %v1436
        %v1438 = vpop.f32.mrb[0].mxu0
        %v1439 = vadd.f32 %v1087, %v1438
        %v1440 = vpop.f32.mrb[0].mxu0
        %v1441 = vadd.f32 %v1089, %v1440
        %v1442 = vpop.f32.mrb[0].mxu0
        %v1443 = vadd.f32 %v1091, %v1442
        %1444 = vdwg.mxu0
        %s1445 = scalar_lea.vmem [#allocation6], 16
        %v1446 = vld [vmem:[%s1445] sm:$0xf]
        %v1447 = vld [vmem:[%s1445 + $0x4] sm:$0xf]
        %v1448 = vld [vmem:[#allocation2 + $0x10] sm:$0xff]
        %v1449 = vld [vmem:[#allocation2 + $0x18] sm:$0xff]
        %v1450 = vld [vmem:[#allocation2 + $0x20] sm:$0xff]
        %v1451 = vld [vmem:[#allocation2 + $0x28] sm:$0xff]
        %v1452 = vld [vmem:[#allocation2 + $0x30] sm:$0xff]
        %v1453 = vld [vmem:[#allocation2 + $0x38] sm:$0xff]
        %v1454 = vld [vmem:[#allocation2 + $0x40] sm:$0xff]
        %v1455 = vld [vmem:[#allocation2 + $0x48] sm:$0xff]
        %v1456 = vld [vmem:[#allocation2 + $0x50] sm:$0xff]
        %v1457 = vld [vmem:[#allocation2 + $0x58] sm:$0xff]
        %v1458 = vld [vmem:[#allocation2 + $0x60] sm:$0xff]
        %v1459 = vld [vmem:[#allocation2 + $0x68] sm:$0xff]
        %v1460 = vld [vmem:[#allocation2 + $0x70] sm:$0xff]
        %v1461 = vld [vmem:[#allocation2 + $0x78] sm:$0xff]
        %v1462 = vld [vmem:[#allocation2 + $0x80] sm:$0xff]
        %v1463 = vld [vmem:[#allocation2 + $0x88] sm:$0xff]
        %v1464 = vld [vmem:[#allocation2 + $0xa0] sm:$0xff]
        %v1465 = vld [vmem:[#allocation2 + $0xa8] sm:$0xff]
        %v1466 = vld [vmem:[#allocation2 + $0xb0] sm:$0xff]
        %v1467 = vld [vmem:[#allocation2 + $0xb8] sm:$0xff]
        %v1468 = vld [vmem:[#allocation2 + $0xc0] sm:$0xff]
        %v1469 = vld [vmem:[#allocation2 + $0xc8] sm:$0xff]
        %v1470 = vld [vmem:[#allocation2 + $0xd0] sm:$0xff]
        %v1471 = vld [vmem:[#allocation2 + $0xd8] sm:$0xff]
        %v1472 = vld [vmem:[#allocation2 + $0xe0] sm:$0xff]
        %v1473 = vld [vmem:[#allocation2 + $0xe8] sm:$0xff]
        %v1474 = vld [vmem:[#allocation2 + $0xf0] sm:$0xff]
        %v1475 = vld [vmem:[#allocation2 + $0xf8] sm:$0xff]
        %v1476 = vld [vmem:[#allocation2 + $0x100] sm:$0xff]
        %v1477 = vld [vmem:[#allocation2 + $0x108] sm:$0xff]
        %v1478 = vld [vmem:[#allocation2 + $0x110] sm:$0xff]
        %v1479 = vld [vmem:[#allocation2 + $0x118] sm:$0xff]
        %v1480 = vld [vmem:[#allocation2 + $0x130] sm:$0xff]
        %v1481 = vld [vmem:[#allocation2 + $0x138] sm:$0xff]
        %v1482 = vld [vmem:[#allocation2 + $0x140] sm:$0xff]
        %v1483 = vld [vmem:[#allocation2 + $0x148] sm:$0xff]
        %v1484 = vld [vmem:[#allocation2 + $0x150] sm:$0xff]
        %v1485 = vld [vmem:[#allocation2 + $0x158] sm:$0xff]
        %v1486 = vld [vmem:[#allocation2 + $0x160] sm:$0xff]
        %v1487 = vld [vmem:[#allocation2 + $0x168] sm:$0xff]
        %v1488 = vld [vmem:[#allocation2 + $0x170] sm:$0xff]
        %v1489 = vld [vmem:[#allocation2 + $0x178] sm:$0xff]
        %v1490 = vld [vmem:[#allocation2 + $0x180] sm:$0xff]
        %v1491 = vld [vmem:[#allocation2 + $0x188] sm:$0xff]
        %v1492 = vld [vmem:[#allocation2 + $0x190] sm:$0xff]
        %v1493 = vld [vmem:[#allocation2 + $0x198] sm:$0xff]
        %v1494 = vld [vmem:[#allocation2 + $0x1a0] sm:$0xff]
        %v1495 = vld [vmem:[#allocation2 + $0x1a8] sm:$0xff]
        %v1498 = vunpack.c.l.b16 %v1446
        %v1499 = vunpack.c.l.b16 %v1447
        %v1500 = vpack.c.b16 %v1499, %v1498
        %v1502 = vsel %vm745, %v1500, 0
        %1504 = vmatprep.subr.bf16.mxu0 %v1449
        %1505 = vmatpush1.bf16.msra.mxu0 %v1448
        %1506 = vmatprep.subr.bf16.mxu0 %v1465
        %1507 = vmatpush1.bf16.msra.mxu0 %v1464
        %1508 = vmatprep.subr.bf16.mxu0 %v1481
        %1509 = vmatpush1.bf16.msra.mxu0 %v1480
        %1510 = vmatprep.subr.bf16.mxu0 0
        %1511 = vmatpush1.bf16.msra.mxu0 0
        %1512 = vmatprep.subr.bf16.mxu0 0
        %1513 = vmatpush1.bf16.msra.mxu0 0
        %1514 = vmatprep.subr.bf16.mxu0 0
        %1515 = vmatpush1.bf16.msra.mxu0 0
        %1516 = vmatprep.subr.bf16.mxu0 0
        %1517 = vmatpush1.bf16.msra.mxu0 0
        %1518 = vmatprep.subr.bf16.mxu0 0
        %1519 = vmatpush1.bf16.msra.mxu0 0
        %1520 = vmatprep.subr.bf16.mxu0 0
        %1521 = vmatpush1.bf16.msra.mxu0 0
        %1522 = vmatprep.subr.bf16.mxu0 0
        %1523 = vmatpush1.bf16.msra.mxu0 0
        %1524 = vmatprep.subr.bf16.mxu0 0
        %1525 = vmatpush1.bf16.msra.mxu0 0
        %1526 = vmatprep.subr.bf16.mxu0 0
        %1527 = vmatpush1.bf16.msra.mxu0 0
        %1528 = vmatprep.subr.bf16.mxu0 0
        %1529 = vmatpush1.bf16.msra.mxu0 0
        %1530 = vmatprep.subr.bf16.mxu0 0
        %1531 = vmatpush1.bf16.msra.mxu0 0
        %1532 = vmatprep.subr.bf16.mxu0 0
        %1533 = vmatpush1.bf16.msra.mxu0 0
        %1534 = vmatprep.subr.bf16.mxu0 0
        %1535 = vmatpush1.bf16.msra.mxu0 0
        %1536 = vmatprep.mubr.bf16.mxu0 0
        %1537 = vmatmul.mubr.bf16.gmra.mrb[0].mxu0 %v1502
        %v1538 = vpop.f32.mrb[0].mxu0
        %v1539 = vadd.f32 0.0, %v1538
        %v1540 = vpop.f32.mrb[0].mxu0
        %v1541 = vadd.f32 0.0, %v1540
        %v1542 = vpop.f32.mrb[0].mxu0
        %v1543 = vadd.f32 0.0, %v1542
        %v1544 = vpop.f32.mrb[0].mxu0
        %v1545 = vadd.f32 0.0, %v1544
        %1546 = vdwg.mxu0
        %1547 = vmatprep.subr.bf16.mxu0 %v1451
        %1548 = vmatpush1.bf16.msra.mxu0 %v1450
        %1549 = vmatprep.subr.bf16.mxu0 %v1467
        %1550 = vmatpush1.bf16.msra.mxu0 %v1466
        %1551 = vmatprep.subr.bf16.mxu0 %v1483
        %1552 = vmatpush1.bf16.msra.mxu0 %v1482
        %1553 = vmatprep.subr.bf16.mxu0 0
        %1554 = vmatpush1.bf16.msra.mxu0 0
        %1555 = vmatprep.subr.bf16.mxu0 0
        %1556 = vmatpush1.bf16.msra.mxu0 0
        %1557 = vmatprep.subr.bf16.mxu0 0
        %1558 = vmatpush1.bf16.msra.mxu0 0
        %1559 = vmatprep.subr.bf16.mxu0 0
        %1560 = vmatpush1.bf16.msra.mxu0 0
        %1561 = vmatprep.subr.bf16.mxu0 0
        %1562 = vmatpush1.bf16.msra.mxu0 0
        %1563 = vmatprep.subr.bf16.mxu0 0
        %1564 = vmatpush1.bf16.msra.mxu0 0
        %1565 = vmatprep.subr.bf16.mxu0 0
        %1566 = vmatpush1.bf16.msra.mxu0 0
        %1567 = vmatprep.subr.bf16.mxu0 0
        %1568 = vmatpush1.bf16.msra.mxu0 0
        %1569 = vmatprep.subr.bf16.mxu0 0
        %1570 = vmatpush1.bf16.msra.mxu0 0
        %1571 = vmatprep.subr.bf16.mxu0 0
        %1572 = vmatpush1.bf16.msra.mxu0 0
        %1573 = vmatprep.subr.bf16.mxu0 0
        %1574 = vmatpush1.bf16.msra.mxu0 0
        %1575 = vmatprep.subr.bf16.mxu0 0
        %1576 = vmatpush1.bf16.msra.mxu0 0
        %1577 = vmatprep.subr.bf16.mxu0 0
        %1578 = vmatpush1.bf16.msra.mxu0 0
        %1579 = vmatprep.mubr.bf16.mxu0 0
        %1580 = vmatmul.mubr.bf16.gmra.mrb[0].mxu0 %v1502
        %v1581 = vpop.f32.mrb[0].mxu0
        %v1582 = vadd.f32 0.0, %v1581
        %v1583 = vpop.f32.mrb[0].mxu0
        %v1584 = vadd.f32 0.0, %v1583
        %v1585 = vpop.f32.mrb[0].mxu0
        %v1586 = vadd.f32 0.0, %v1585
        %v1587 = vpop.f32.mrb[0].mxu0
        %v1588 = vadd.f32 0.0, %v1587
        %1589 = vdwg.mxu0
        %1590 = vmatprep.subr.bf16.mxu0 %v1453
        %1591 = vmatpush1.bf16.msra.mxu0 %v1452
        %1592 = vmatprep.subr.bf16.mxu0 %v1469
        %1593 = vmatpush1.bf16.msra.mxu0 %v1468
        %1594 = vmatprep.subr.bf16.mxu0 %v1485
        %1595 = vmatpush1.bf16.msra.mxu0 %v1484
        %1596 = vmatprep.subr.bf16.mxu0 0
        %1597 = vmatpush1.bf16.msra.mxu0 0
        %1598 = vmatprep.subr.bf16.mxu0 0
        %1599 = vmatpush1.bf16.msra.mxu0 0
        %1600 = vmatprep.subr.bf16.mxu0 0
        %1601 = vmatpush1.bf16.msra.mxu0 0
        %1602 = vmatprep.subr.bf16.mxu0 0
        %1603 = vmatpush1.bf16.msra.mxu0 0
        %1604 = vmatprep.subr.bf16.mxu0 0
        %1605 = vmatpush1.bf16.msra.mxu0 0
        %1606 = vmatprep.subr.bf16.mxu0 0
        %1607 = vmatpush1.bf16.msra.mxu0 0
        %1608 = vmatprep.subr.bf16.mxu0 0
        %1609 = vmatpush1.bf16.msra.mxu0 0
        %1610 = vmatprep.subr.bf16.mxu0 0
        %1611 = vmatpush1.bf16.msra.mxu0 0
        %1612 = vmatprep.subr.bf16.mxu0 0
        %1613 = vmatpush1.bf16.msra.mxu0 0
        %1614 = vmatprep.subr.bf16.mxu0 0
        %1615 = vmatpush1.bf16.msra.mxu0 0
        %1616 = vmatprep.subr.bf16.mxu0 0
        %1617 = vmatpush1.bf16.msra.mxu0 0
        %1618 = vmatprep.subr.bf16.mxu0 0
        %1619 = vmatpush1.bf16.msra.mxu0 0
        %1620 = vmatprep.subr.bf16.mxu0 0
        %1621 = vmatpush1.bf16.msra.mxu0 0
        %1622 = vmatprep.mubr.bf16.mxu0 0
        %1623 = vmatmul.mubr.bf16.gmra.mrb[0].mxu0 %v1502
        %v1624 = vpop.f32.mrb[0].mxu0
        %v1625 = vadd.f32 0.0, %v1624
        %v1626 = vpop.f32.mrb[0].mxu0
        %v1627 = vadd.f32 0.0, %v1626
        %v1628 = vpop.f32.mrb[0].mxu0
        %v1629 = vadd.f32 0.0, %v1628
        %v1630 = vpop.f32.mrb[0].mxu0
        %v1631 = vadd.f32 0.0, %v1630
        %1632 = vdwg.mxu0
        %1633 = vmatprep.subr.bf16.mxu0 %v1455
        %1634 = vmatpush1.bf16.msra.mxu0 %v1454
        %1635 = vmatprep.subr.bf16.mxu0 %v1471
        %1636 = vmatpush1.bf16.msra.mxu0 %v1470
        %1637 = vmatprep.subr.bf16.mxu0 %v1487
        %1638 = vmatpush1.bf16.msra.mxu0 %v1486
        %1639 = vmatprep.subr.bf16.mxu0 0
        %1640 = vmatpush1.bf16.msra.mxu0 0
        %1641 = vmatprep.subr.bf16.mxu0 0
        %1642 = vmatpush1.bf16.msra.mxu0 0
        %1643 = vmatprep.subr.bf16.mxu0 0
        %1644 = vmatpush1.bf16.msra.mxu0 0
        %1645 = vmatprep.subr.bf16.mxu0 0
        %1646 = vmatpush1.bf16.msra.mxu0 0
        %1647 = vmatprep.subr.bf16.mxu0 0
        %1648 = vmatpush1.bf16.msra.mxu0 0
        %1649 = vmatprep.subr.bf16.mxu0 0
        %1650 = vmatpush1.bf16.msra.mxu0 0
        %1651 = vmatprep.subr.bf16.mxu0 0
        %1652 = vmatpush1.bf16.msra.mxu0 0
        %1653 = vmatprep.subr.bf16.mxu0 0
        %1654 = vmatpush1.bf16.msra.mxu0 0
        %1655 = vmatprep.subr.bf16.mxu0 0
        %1656 = vmatpush1.bf16.msra.mxu0 0
        %1657 = vmatprep.subr.bf16.mxu0 0
        %1658 = vmatpush1.bf16.msra.mxu0 0
        %1659 = vmatprep.subr.bf16.mxu0 0
        %1660 = vmatpush1.bf16.msra.mxu0 0
        %1661 = vmatprep.subr.bf16.mxu0 0
        %1662 = vmatpush1.bf16.msra.mxu0 0
        %1663 = vmatprep.subr.bf16.mxu0 0
        %1664 = vmatpush1.bf16.msra.mxu0 0
        %1665 = vmatprep.mubr.bf16.mxu0 0
        %1666 = vmatmul.mubr.bf16.gmra.mrb[0].mxu0 %v1502
        %v1667 = vpop.f32.mrb[0].mxu0
        %v1668 = vadd.f32 0.0, %v1667
        %v1669 = vpop.f32.mrb[0].mxu0
        %v1670 = vadd.f32 0.0, %v1669
        %v1671 = vpop.f32.mrb[0].mxu0
        %v1672 = vadd.f32 0.0, %v1671
        %v1673 = vpop.f32.mrb[0].mxu0
        %v1674 = vadd.f32 0.0, %v1673
        %1675 = vdwg.mxu0
        %1676 = vmatprep.subr.bf16.mxu0 %v1457
        %1677 = vmatpush1.bf16.msra.mxu0 %v1456
        %1678 = vmatprep.subr.bf16.mxu0 %v1473
        %1679 = vmatpush1.bf16.msra.mxu0 %v1472
        %1680 = vmatprep.subr.bf16.mxu0 %v1489
        %1681 = vmatpush1.bf16.msra.mxu0 %v1488
        %1682 = vmatprep.subr.bf16.mxu0 0
        %1683 = vmatpush1.bf16.msra.mxu0 0
        %1684 = vmatprep.subr.bf16.mxu0 0
        %1685 = vmatpush1.bf16.msra.mxu0 0
        %1686 = vmatprep.subr.bf16.mxu0 0
        %1687 = vmatpush1.bf16.msra.mxu0 0
        %1688 = vmatprep.subr.bf16.mxu0 0
        %1689 = vmatpush1.bf16.msra.mxu0 0
        %1690 = vmatprep.subr.bf16.mxu0 0
        %1691 = vmatpush1.bf16.msra.mxu0 0
        %1692 = vmatprep.subr.bf16.mxu0 0
        %1693 = vmatpush1.bf16.msra.mxu0 0
        %1694 = vmatprep.subr.bf16.mxu0 0
        %1695 = vmatpush1.bf16.msra.mxu0 0
        %1696 = vmatprep.subr.bf16.mxu0 0
        %1697 = vmatpush1.bf16.msra.mxu0 0
        %1698 = vmatprep.subr.bf16.mxu0 0
        %1699 = vmatpush1.bf16.msra.mxu0 0
        %1700 = vmatprep.subr.bf16.mxu0 0
        %1701 = vmatpush1.bf16.msra.mxu0 0
        %1702 = vmatprep.subr.bf16.mxu0 0
        %1703 = vmatpush1.bf16.msra.mxu0 0
        %1704 = vmatprep.subr.bf16.mxu0 0
        %1705 = vmatpush1.bf16.msra.mxu0 0
        %1706 = vmatprep.subr.bf16.mxu0 0
        %1707 = vmatpush1.bf16.msra.mxu0 0
        %1708 = vmatprep.mubr.bf16.mxu0 0
        %1709 = vmatmul.mubr.bf16.gmra.mrb[0].mxu0 %v1502
        %v1710 = vpop.f32.mrb[0].mxu0
        %v1711 = vadd.f32 0.0, %v1710
        %v1712 = vpop.f32.mrb[0].mxu0
        %v1713 = vadd.f32 0.0, %v1712
        %v1714 = vpop.f32.mrb[0].mxu0
        %v1715 = vadd.f32 0.0, %v1714
        %v1716 = vpop.f32.mrb[0].mxu0
        %v1717 = vadd.f32 0.0, %v1716
        %1718 = vdwg.mxu0
        %1719 = vmatprep.subr.bf16.mxu0 %v1459
        %1720 = vmatpush1.bf16.msra.mxu0 %v1458
        %1721 = vmatprep.subr.bf16.mxu0 %v1475
        %1722 = vmatpush1.bf16.msra.mxu0 %v1474
        %1723 = vmatprep.subr.bf16.mxu0 %v1491
        %1724 = vmatpush1.bf16.msra.mxu0 %v1490
        %1725 = vmatprep.subr.bf16.mxu0 0
        %1726 = vmatpush1.bf16.msra.mxu0 0
        %1727 = vmatprep.subr.bf16.mxu0 0
        %1728 = vmatpush1.bf16.msra.mxu0 0
        %1729 = vmatprep.subr.bf16.mxu0 0
        %1730 = vmatpush1.bf16.msra.mxu0 0
        %1731 = vmatprep.subr.bf16.mxu0 0
        %1732 = vmatpush1.bf16.msra.mxu0 0
        %1733 = vmatprep.subr.bf16.mxu0 0
        %1734 = vmatpush1.bf16.msra.mxu0 0
        %1735 = vmatprep.subr.bf16.mxu0 0
        %1736 = vmatpush1.bf16.msra.mxu0 0
        %1737 = vmatprep.subr.bf16.mxu0 0
        %1738 = vmatpush1.bf16.msra.mxu0 0
        %1739 = vmatprep.subr.bf16.mxu0 0
        %1740 = vmatpush1.bf16.msra.mxu0 0
        %1741 = vmatprep.subr.bf16.mxu0 0
        %1742 = vmatpush1.bf16.msra.mxu0 0
        %1743 = vmatprep.subr.bf16.mxu0 0
        %1744 = vmatpush1.bf16.msra.mxu0 0
        %1745 = vmatprep.subr.bf16.mxu0 0
        %1746 = vmatpush1.bf16.msra.mxu0 0
        %1747 = vmatprep.subr.bf16.mxu0 0
        %1748 = vmatpush1.bf16.msra.mxu0 0
        %1749 = vmatprep.subr.bf16.mxu0 0
        %1750 = vmatpush1.bf16.msra.mxu0 0
        %1751 = vmatprep.mubr.bf16.mxu0 0
        %1752 = vmatmul.mubr.bf16.gmra.mrb[0].mxu0 %v1502
        %v1753 = vpop.f32.mrb[0].mxu0
        %v1754 = vadd.f32 0.0, %v1753
        %v1755 = vpop.f32.mrb[0].mxu0
        %v1756 = vadd.f32 0.0, %v1755
        %v1757 = vpop.f32.mrb[0].mxu0
        %v1758 = vadd.f32 0.0, %v1757
        %v1759 = vpop.f32.mrb[0].mxu0
        %v1760 = vadd.f32 0.0, %v1759
        %1761 = vdwg.mxu0
        %1762 = vmatprep.subr.bf16.mxu0 %v1461
        %1763 = vmatpush1.bf16.msra.mxu0 %v1460
        %1764 = vmatprep.subr.bf16.mxu0 %v1477
        %1765 = vmatpush1.bf16.msra.mxu0 %v1476
        %1766 = vmatprep.subr.bf16.mxu0 %v1493
        %1767 = vmatpush1.bf16.msra.mxu0 %v1492
        %1768 = vmatprep.subr.bf16.mxu0 0
        %1769 = vmatpush1.bf16.msra.mxu0 0
        %1770 = vmatprep.subr.bf16.mxu0 0
        %1771 = vmatpush1.bf16.msra.mxu0 0
        %1772 = vmatprep.subr.bf16.mxu0 0
        %1773 = vmatpush1.bf16.msra.mxu0 0
        %1774 = vmatprep.subr.bf16.mxu0 0
        %1775 = vmatpush1.bf16.msra.mxu0 0
        %1776 = vmatprep.subr.bf16.mxu0 0
        %1777 = vmatpush1.bf16.msra.mxu0 0
        %1778 = vmatprep.subr.bf16.mxu0 0
        %1779 = vmatpush1.bf16.msra.mxu0 0
        %1780 = vmatprep.subr.bf16.mxu0 0
        %1781 = vmatpush1.bf16.msra.mxu0 0
        %1782 = vmatprep.subr.bf16.mxu0 0
        %1783 = vmatpush1.bf16.msra.mxu0 0
        %1784 = vmatprep.subr.bf16.mxu0 0
        %1785 = vmatpush1.bf16.msra.mxu0 0
        %1786 = vmatprep.subr.bf16.mxu0 0
        %1787 = vmatpush1.bf16.msra.mxu0 0
        %1788 = vmatprep.subr.bf16.mxu0 0
        %1789 = vmatpush1.bf16.msra.mxu0 0
        %1790 = vmatprep.subr.bf16.mxu0 0
        %1791 = vmatpush1.bf16.msra.mxu0 0
        %1792 = vmatprep.subr.bf16.mxu0 0
        %1793 = vmatpush1.bf16.msra.mxu0 0
        %1794 = vmatprep.mubr.bf16.mxu0 0
        %1795 = vmatmul.mubr.bf16.gmra.mrb[0].mxu0 %v1502
        %v1796 = vpop.f32.mrb[0].mxu0
        %v1797 = vadd.f32 0.0, %v1796
        %v1798 = vpop.f32.mrb[0].mxu0
        %v1799 = vadd.f32 0.0, %v1798
        %v1800 = vpop.f32.mrb[0].mxu0
        %v1801 = vadd.f32 0.0, %v1800
        %v1802 = vpop.f32.mrb[0].mxu0
        %v1803 = vadd.f32 0.0, %v1802
        %1804 = vdwg.mxu0
        %1805 = vmatprep.subr.bf16.mxu0 %v1463
        %1806 = vmatpush1.bf16.msra.mxu0 %v1462
        %1807 = vmatprep.subr.bf16.mxu0 %v1479
        %1808 = vmatpush1.bf16.msra.mxu0 %v1478
        %1809 = vmatprep.subr.bf16.mxu0 %v1495
        %1810 = vmatpush1.bf16.msra.mxu0 %v1494
        %1811 = vmatprep.subr.bf16.mxu0 0
        %1812 = vmatpush1.bf16.msra.mxu0 0
        %1813 = vmatprep.subr.bf16.mxu0 0
        %1814 = vmatpush1.bf16.msra.mxu0 0
        %1815 = vmatprep.subr.bf16.mxu0 0
        %1816 = vmatpush1.bf16.msra.mxu0 0
        %1817 = vmatprep.subr.bf16.mxu0 0
        %1818 = vmatpush1.bf16.msra.mxu0 0
        %1819 = vmatprep.subr.bf16.mxu0 0
        %1820 = vmatpush1.bf16.msra.mxu0 0
        %1821 = vmatprep.subr.bf16.mxu0 0
        %1822 = vmatpush1.bf16.msra.mxu0 0
        %1823 = vmatprep.subr.bf16.mxu0 0
        %1824 = vmatpush1.bf16.msra.mxu0 0
        %1825 = vmatprep.subr.bf16.mxu0 0
        %1826 = vmatpush1.bf16.msra.mxu0 0
        %1827 = vmatprep.subr.bf16.mxu0 0
        %1828 = vmatpush1.bf16.msra.mxu0 0
        %1829 = vmatprep.subr.bf16.mxu0 0
        %1830 = vmatpush1.bf16.msra.mxu0 0
        %1831 = vmatprep.subr.bf16.mxu0 0
        %1832 = vmatpush1.bf16.msra.mxu0 0
        %1833 = vmatprep.subr.bf16.mxu0 0
        %1834 = vmatpush1.bf16.msra.mxu0 0
        %1835 = vmatprep.subr.bf16.mxu0 0
        %1836 = vmatpush1.bf16.msra.mxu0 0
        %1837 = vmatprep.mubr.bf16.mxu0 0
        %1838 = vmatmul.mubr.bf16.gmra.mrb[0].mxu0 %v1502
        %v1839 = vpop.f32.mrb[0].mxu0
        %v1840 = vadd.f32 0.0, %v1839
        %v1841 = vpop.f32.mrb[0].mxu0
        %v1842 = vadd.f32 0.0, %v1841
        %v1843 = vpop.f32.mrb[0].mxu0
        %v1844 = vadd.f32 0.0, %v1843
        %v1845 = vpop.f32.mrb[0].mxu0
        %v1846 = vadd.f32 0.0, %v1845
        %1847 = vdwg.mxu0
        %v1848 = vadd.f32 %v1136, %v1539
        %v1849 = vadd.f32 %v1138, %v1541
        %v1850 = vadd.f32 %v1179, %v1582
        %v1851 = vadd.f32 %v1181, %v1584
        %v1852 = vadd.f32 %v1222, %v1625
        %v1853 = vadd.f32 %v1224, %v1627
        %v1854 = vadd.f32 %v1265, %v1668
        %v1855 = vadd.f32 %v1267, %v1670
        %v1856 = vadd.f32 %v1308, %v1711
        %v1857 = vadd.f32 %v1310, %v1713
        %v1858 = vadd.f32 %v1351, %v1754
        %v1859 = vadd.f32 %v1353, %v1756
        %v1860 = vadd.f32 %v1394, %v1797
        %v1861 = vadd.f32 %v1396, %v1799
        %v1862 = vadd.f32 %v1437, %v1840
        %v1863 = vadd.f32 %v1439, %v1842
        %v1864 = vadd.f32 %v1140, %v1543
        %v1865 = vadd.f32 %v1142, %v1545
        %v1866 = vadd.f32 %v1183, %v1586
        %v1867 = vadd.f32 %v1185, %v1588
        %v1868 = vadd.f32 %v1226, %v1629
        %v1869 = vadd.f32 %v1228, %v1631
        %v1870 = vadd.f32 %v1269, %v1672
        %v1871 = vadd.f32 %v1271, %v1674
        %v1872 = vadd.f32 %v1312, %v1715
        %v1873 = vadd.f32 %v1314, %v1717
        %v1874 = vadd.f32 %v1355, %v1758
        %v1875 = vadd.f32 %v1357, %v1760
        %v1876 = vadd.f32 %v1398, %v1801
        %v1877 = vadd.f32 %v1400, %v1803
        %v1878 = vadd.f32 %v1441, %v1844
        %v1879 = vadd.f32 %v1443, %v1846
        %v1880 = vlaneseq
        %v1881 = vand.u32 %v1880, 127
        %v1882 = vadd.s32 %v1881, 128
        %v1883 = vadd.s32 %v1881, 256
        %v1884 = vadd.s32 %v1881, 384
        %v1885 = vadd.s32 %v1881, 512
        %v1886 = vadd.s32 %v1881, 640
        %v1887 = vadd.s32 %v1881, 768
        %v1888 = vadd.s32 %v1881, 896
        %v1889 = vadd.s32 %v1881, 1024
        %v1890 = vadd.s32 %v1881, 1152
        %v1891 = vadd.s32 %v1881, 1280
        %v1892 = vadd.s32 %v1881, 1408
        %v1893 = vadd.s32 %v1881, 1536
        %v1894 = vadd.s32 %v1881, 1664
        %v1895 = vadd.s32 %v1881, 1792
        %v1896 = vadd.s32 %v1881, 1920
        %v1897 = vand.u32 %v1881, 127
        %v1898 = vand.u32 %v1882, 127
        %v1899 = vand.u32 %v1883, 127
        %v1900 = vand.u32 %v1884, 127
        %v1901 = vand.u32 %v1885, 127
        %v1902 = vand.u32 %v1886, 127
        %v1903 = vand.u32 %v1887, 127
        %v1904 = vand.u32 %v1888, 127
        %v1905 = vand.u32 %v1889, 127
        %v1906 = vand.u32 %v1890, 127
        %v1907 = vand.u32 %v1891, 127
        %v1908 = vand.u32 %v1892, 127
        %v1909 = vand.u32 %v1893, 127
        %v1910 = vand.u32 %v1894, 127
        %v1911 = vand.u32 %v1895, 127
        %v1912 = vand.u32 %v1896, 127
        %vm1913 = vcmp.lt.s32.totalorder %v1897, 16
        %vm1914 = vcmp.lt.s32.totalorder %v1898, 16
        %vm1915 = vcmp.lt.s32.totalorder %v1899, 16
        %vm1916 = vcmp.lt.s32.totalorder %v1900, 16
        %vm1917 = vcmp.lt.s32.totalorder %v1901, 16
        %vm1918 = vcmp.lt.s32.totalorder %v1902, 16
        %vm1919 = vcmp.lt.s32.totalorder %v1903, 16
        %vm1920 = vcmp.lt.s32.totalorder %v1904, 16
        %vm1921 = vcmp.lt.s32.totalorder %v1905, 16
        %vm1922 = vcmp.lt.s32.totalorder %v1906, 16
        %vm1923 = vcmp.lt.s32.totalorder %v1907, 16
        %vm1924 = vcmp.lt.s32.totalorder %v1908, 16
        %vm1925 = vcmp.lt.s32.totalorder %v1909, 16
        %vm1926 = vcmp.lt.s32.totalorder %v1910, 16
        %vm1927 = vcmp.lt.s32.totalorder %v1911, 16
        %vm1928 = vcmp.lt.s32.totalorder %v1912, 16
        %v1929 = vsel %vm1913, 1, 0
        %v1930 = vsel %vm1914, 1, 0
        %v1931 = vsel %vm1915, 1, 0
        %v1932 = vsel %vm1916, 1, 0
        %v1933 = vsel %vm1917, 1, 0
        %v1934 = vsel %vm1918, 1, 0
        %v1935 = vsel %vm1919, 1, 0
        %v1936 = vsel %vm1920, 1, 0
        %v1937 = vsel %vm1921, 1, 0
        %v1938 = vsel %vm1922, 1, 0
        %v1939 = vsel %vm1923, 1, 0
        %v1940 = vsel %vm1924, 1, 0
        %v1941 = vsel %vm1925, 1, 0
        %v1942 = vsel %vm1926, 1, 0
        %v1943 = vsel %vm1927, 1, 0
        %v1944 = vsel %vm1928, 1, 0
        %v1945 = vcvt.s32.f32 %v1929
        %v1946 = vcvt.s32.f32 %v1930
        %v1947 = vcvt.s32.f32 %v1931
        %v1948 = vcvt.s32.f32 %v1932
        %v1949 = vcvt.s32.f32 %v1933
        %v1950 = vcvt.s32.f32 %v1934
        %v1951 = vcvt.s32.f32 %v1935
        %v1952 = vcvt.s32.f32 %v1936
        %v1953 = vcvt.s32.f32 %v1937
        %v1954 = vcvt.s32.f32 %v1938
        %v1955 = vcvt.s32.f32 %v1939
        %v1956 = vcvt.s32.f32 %v1940
        %v1957 = vcvt.s32.f32 %v1941
        %v1958 = vcvt.s32.f32 %v1942
        %v1959 = vcvt.s32.f32 %v1943
        %v1960 = vcvt.s32.f32 %v1944
        %v1961 = vmul.f32 %v1848, %v1945
        %v1962 = vmul.f32 %v1849, %v1946
        %v1963 = vmul.f32 %v1850, %v1947
        %v1964 = vmul.f32 %v1851, %v1948
        %v1965 = vmul.f32 %v1852, %v1949
        %v1966 = vmul.f32 %v1853, %v1950
        %v1967 = vmul.f32 %v1854, %v1951
        %v1968 = vmul.f32 %v1855, %v1952
        %v1969 = vmul.f32 %v1856, %v1953
        %v1970 = vmul.f32 %v1857, %v1954
        %v1971 = vmul.f32 %v1858, %v1955
        %v1972 = vmul.f32 %v1859, %v1956
        %v1973 = vmul.f32 %v1860, %v1957
        %v1974 = vmul.f32 %v1861, %v1958
        %v1975 = vmul.f32 %v1862, %v1959
        %v1976 = vmul.f32 %v1863, %v1960
        %v1977 = vmul.f32 %v1864, %v1945
        %v1978 = vmul.f32 %v1865, %v1946
        %v1979 = vmul.f32 %v1866, %v1947
        %v1980 = vmul.f32 %v1867, %v1948
        %v1981 = vmul.f32 %v1868, %v1949
        %v1982 = vmul.f32 %v1869, %v1950
        %v1983 = vmul.f32 %v1870, %v1951
        %v1984 = vmul.f32 %v1871, %v1952
        %v1985 = vmul.f32 %v1872, %v1953
        %v1986 = vmul.f32 %v1873, %v1954
        %v1987 = vmul.f32 %v1874, %v1955
        %v1988 = vmul.f32 %v1875, %v1956
        %v1989 = vmul.f32 %v1876, %v1957
        %v1990 = vmul.f32 %v1877, %v1958
        %v1991 = vmul.f32 %v1878, %v1959
        %v1992 = vmul.f32 %v1879, %v1960
        %v1993 = vadd.f32 %v1961, %v1962
        %v1994 = vadd.f32 %v1993, %v1963
        %v1995 = vadd.f32 %v1994, %v1964
        %v1996 = vadd.f32 %v1995, %v1965
        %v1997 = vadd.f32 %v1996, %v1966
        %v1998 = vadd.f32 %v1997, %v1967
        %v1999 = vadd.f32 %v1998, %v1968
        %v2000 = vadd.f32 %v1999, %v1969
        %v2001 = vadd.f32 %v2000, %v1970
        %v2002 = vadd.f32 %v2001, %v1971
        %v2003 = vadd.f32 %v2002, %v1972
        %v2004 = vadd.f32 %v2003, %v1973
        %v2005 = vadd.f32 %v2004, %v1974
        %v2006 = vadd.f32 %v2005, %v1975
        %v2007 = vadd.f32 %v2006, %v1976
        %2008 = vadd.xlane.f32.xlu0 %v2007
        %v2009 = vpop.xlane.xlu0 %2008
        %v2010 = vadd.f32 %v1977, %v1978
        %v2011 = vadd.f32 %v2010, %v1979
        %v2012 = vadd.f32 %v2011, %v1980
        %v2013 = vadd.f32 %v2012, %v1981
        %v2014 = vadd.f32 %v2013, %v1982
        %v2015 = vadd.f32 %v2014, %v1983
        %v2016 = vadd.f32 %v2015, %v1984
        %v2017 = vadd.f32 %v2016, %v1985
        %v2018 = vadd.f32 %v2017, %v1986
        %v2019 = vadd.f32 %v2018, %v1987
        %v2020 = vadd.f32 %v2019, %v1988
        %v2021 = vadd.f32 %v2020, %v1989
        %v2022 = vadd.f32 %v2021, %v1990
        %v2023 = vadd.f32 %v2022, %v1991
        %v2024 = vadd.f32 %v2023, %v1992
        %2025 = vadd.xlane.f32.xlu0 %v2024
        %v2026 = vpop.xlane.xlu0 %2025
        %v2027 = vmul.f32 %v1961, %v1961
        %v2028 = vmul.f32 %v1962, %v1962
        %v2029 = vmul.f32 %v1963, %v1963
        %v2030 = vmul.f32 %v1964, %v1964
        %v2031 = vmul.f32 %v1965, %v1965
        %v2032 = vmul.f32 %v1966, %v1966
        %v2033 = vmul.f32 %v1967, %v1967
        %v2034 = vmul.f32 %v1968, %v1968
        %v2035 = vmul.f32 %v1969, %v1969
        %v2036 = vmul.f32 %v1970, %v1970
        %v2037 = vmul.f32 %v1971, %v1971
        %v2038 = vmul.f32 %v1972, %v1972
        %v2039 = vmul.f32 %v1973, %v1973
        %v2040 = vmul.f32 %v1974, %v1974
        %v2041 = vmul.f32 %v1975, %v1975
        %v2042 = vmul.f32 %v1976, %v1976
        %v2043 = vmul.f32 %v1977, %v1977
        %v2044 = vmul.f32 %v1978, %v1978
        %v2045 = vmul.f32 %v1979, %v1979
        %v2046 = vmul.f32 %v1980, %v1980
        %v2047 = vmul.f32 %v1981, %v1981
        %v2048 = vmul.f32 %v1982, %v1982
        %v2049 = vmul.f32 %v1983, %v1983
        %v2050 = vmul.f32 %v1984, %v1984
        %v2051 = vmul.f32 %v1985, %v1985
        %v2052 = vmul.f32 %v1986, %v1986
        %v2053 = vmul.f32 %v1987, %v1987
        %v2054 = vmul.f32 %v1988, %v1988
        %v2055 = vmul.f32 %v1989, %v1989
        %v2056 = vmul.f32 %v1990, %v1990
        %v2057 = vmul.f32 %v1991, %v1991
        %v2058 = vmul.f32 %v1992, %v1992
        %v2059 = vadd.f32 %v2027, %v2028
        %v2060 = vadd.f32 %v2059, %v2029
        %v2061 = vadd.f32 %v2060, %v2030
        %v2062 = vadd.f32 %v2061, %v2031
        %v2063 = vadd.f32 %v2062, %v2032
        %v2064 = vadd.f32 %v2063, %v2033
        %v2065 = vadd.f32 %v2064, %v2034
        %v2066 = vadd.f32 %v2065, %v2035
        %v2067 = vadd.f32 %v2066, %v2036
        %v2068 = vadd.f32 %v2067, %v2037
        %v2069 = vadd.f32 %v2068, %v2038
        %v2070 = vadd.f32 %v2069, %v2039
        %v2071 = vadd.f32 %v2070, %v2040
        %v2072 = vadd.f32 %v2071, %v2041
        %v2073 = vadd.f32 %v2072, %v2042
        %2074 = vadd.xlane.f32.xlu0 %v2073
        %v2075 = vpop.xlane.xlu0 %2074
        %v2076 = vadd.f32 %v2043, %v2044
        %v2077 = vadd.f32 %v2076, %v2045
        %v2078 = vadd.f32 %v2077, %v2046
        %v2079 = vadd.f32 %v2078, %v2047
        %v2080 = vadd.f32 %v2079, %v2048
        %v2081 = vadd.f32 %v2080, %v2049
        %v2082 = vadd.f32 %v2081, %v2050
        %v2083 = vadd.f32 %v2082, %v2051
        %v2084 = vadd.f32 %v2083, %v2052
        %v2085 = vadd.f32 %v2084, %v2053
        %v2086 = vadd.f32 %v2085, %v2054
        %v2087 = vadd.f32 %v2086, %v2055
        %v2088 = vadd.f32 %v2087, %v2056
        %v2089 = vadd.f32 %v2088, %v2057
        %v2090 = vadd.f32 %v2089, %v2058
        %2091 = vadd.xlane.f32.xlu0 %v2090
        %v2092 = vpop.xlane.xlu0 %2091
        %v2093 = vmul.f32 %v2009, 0.00390625
        %v2094 = vmul.f32 %v2026, 0.00390625
        %v2095 = vmul.f32 %v2075, 0.00390625
        %v2096 = vmul.f32 %v2092, 0.00390625
        %v2097 = vmul.f32 %v2093, %v2093
        %v2098 = vmul.f32 %v2094, %v2094
        %v2099 = vsub.f32 %v2095, %v2097
        %v2100 = vsub.f32 %v2096, %v2098
        %v2101 = vmax.f32 %v2099, 0.0
        %v2102 = vmax.f32 %v2100, 0.0
        %v2103 = vsub.f32 %v1848, %v2093
        %v2104 = vsub.f32 %v1849, %v2093
        %v2105 = vsub.f32 %v1850, %v2093
        %v2106 = vsub.f32 %v1851, %v2093
        %v2107 = vsub.f32 %v1852, %v2093
        %v2108 = vsub.f32 %v1853, %v2093
        %v2109 = vsub.f32 %v1854, %v2093
        %v2110 = vsub.f32 %v1855, %v2093
        %v2111 = vsub.f32 %v1856, %v2093
        %v2112 = vsub.f32 %v1857, %v2093
        %v2113 = vsub.f32 %v1858, %v2093
        %v2114 = vsub.f32 %v1859, %v2093
        %v2115 = vsub.f32 %v1860, %v2093
        %v2116 = vsub.f32 %v1861, %v2093
        %v2117 = vsub.f32 %v1862, %v2093
        %v2118 = vsub.f32 %v1863, %v2093
        %v2119 = vsub.f32 %v1864, %v2094
        %v2120 = vsub.f32 %v1865, %v2094
        %v2121 = vsub.f32 %v1866, %v2094
        %v2122 = vsub.f32 %v1867, %v2094
        %v2123 = vsub.f32 %v1868, %v2094
        %v2124 = vsub.f32 %v1869, %v2094
        %v2125 = vsub.f32 %v1870, %v2094
        %v2126 = vsub.f32 %v1871, %v2094
        %v2127 = vsub.f32 %v1872, %v2094
        %v2128 = vsub.f32 %v1873, %v2094
        %v2129 = vsub.f32 %v1874, %v2094
        %v2130 = vsub.f32 %v1875, %v2094
        %v2131 = vsub.f32 %v1876, %v2094
        %v2132 = vsub.f32 %v1877, %v2094
        %v2133 = vsub.f32 %v1878, %v2094
        %v2134 = vsub.f32 %v1879, %v2094
        %v2135 = vadd.f32 %v2101, 1e-05
        %v2136 = vadd.f32 %v2102, 1e-05
        %v2137 = vrsqrt.pop %v2135
        %v2138 = vrsqrt.pop %v2136
        %v2139 = vmul.f32 %v2103, %v2137
        %v2140 = vmul.f32 %v2104, %v2137
        %v2141 = vmul.f32 %v2105, %v2137
        %v2142 = vmul.f32 %v2106, %v2137
        %v2143 = vmul.f32 %v2107, %v2137
        %v2144 = vmul.f32 %v2108, %v2137
        %v2145 = vmul.f32 %v2109, %v2137
        %v2146 = vmul.f32 %v2110, %v2137
        %v2147 = vmul.f32 %v2111, %v2137
        %v2148 = vmul.f32 %v2112, %v2137
        %v2149 = vmul.f32 %v2113, %v2137
        %v2150 = vmul.f32 %v2114, %v2137
        %v2151 = vmul.f32 %v2115, %v2137
        %v2152 = vmul.f32 %v2116, %v2137
        %v2153 = vmul.f32 %v2117, %v2137
        %v2154 = vmul.f32 %v2118, %v2137
        %v2155 = vmul.f32 %v2119, %v2138
        %v2156 = vmul.f32 %v2120, %v2138
        %v2157 = vmul.f32 %v2121, %v2138
        %v2158 = vmul.f32 %v2122, %v2138
        %v2159 = vmul.f32 %v2123, %v2138
        %v2160 = vmul.f32 %v2124, %v2138
        %v2161 = vmul.f32 %v2125, %v2138
        %v2162 = vmul.f32 %v2126, %v2138
        %v2163 = vmul.f32 %v2127, %v2138
        %v2164 = vmul.f32 %v2128, %v2138
        %v2165 = vmul.f32 %v2129, %v2138
        %v2166 = vmul.f32 %v2130, %v2138
        %v2167 = vmul.f32 %v2131, %v2138
        %v2168 = vmul.f32 %v2132, %v2138
        %v2169 = vmul.f32 %v2133, %v2138
        %v2170 = vmul.f32 %v2134, %v2138
        %v2171 = vmax.f32 %v2139, 0.0
        %v2172 = vmax.f32 %v2140, 0.0
        %v2173 = vmax.f32 %v2141, 0.0
        %v2174 = vmax.f32 %v2142, 0.0
        %v2175 = vmax.f32 %v2143, 0.0
        %v2176 = vmax.f32 %v2144, 0.0
        %v2177 = vmax.f32 %v2145, 0.0
        %v2178 = vmax.f32 %v2146, 0.0
        %v2179 = vmax.f32 %v2147, 0.0
        %v2180 = vmax.f32 %v2148, 0.0
        %v2181 = vmax.f32 %v2149, 0.0
        %v2182 = vmax.f32 %v2150, 0.0
        %v2183 = vmax.f32 %v2151, 0.0
        %v2184 = vmax.f32 %v2152, 0.0
        %v2185 = vmax.f32 %v2153, 0.0
        %v2186 = vmax.f32 %v2154, 0.0
        %v2187 = vmax.f32 %v2155, 0.0
        %v2188 = vmax.f32 %v2156, 0.0
        %v2189 = vmax.f32 %v2157, 0.0
        %v2190 = vmax.f32 %v2158, 0.0
        %v2191 = vmax.f32 %v2159, 0.0
        %v2192 = vmax.f32 %v2160, 0.0
        %v2193 = vmax.f32 %v2161, 0.0
        %v2194 = vmax.f32 %v2162, 0.0
        %v2195 = vmax.f32 %v2163, 0.0
        %v2196 = vmax.f32 %v2164, 0.0
        %v2197 = vmax.f32 %v2165, 0.0
        %v2198 = vmax.f32 %v2166, 0.0
        %v2199 = vmax.f32 %v2167, 0.0
        %v2200 = vmax.f32 %v2168, 0.0
        %v2201 = vmax.f32 %v2169, 0.0
        %v2202 = vmax.f32 %v2170, 0.0
        %v2203 = vld [vmem:[#allocation2 + $0x98] sm:$0xff]
        %v2204 = vld [vmem:[#allocation2 + $0xa0] sm:$0xff]
        %v2205 = vld [vmem:[#allocation2 + $0xa8] sm:$0xff]
        %v2206 = vld [vmem:[#allocation2 + $0xb0] sm:$0xff]
        %v2207 = vld [vmem:[#allocation2 + $0xb8] sm:$0xff]
        %v2208 = vld [vmem:[#allocation2 + $0xc0] sm:$0xff]
        %v2209 = vld [vmem:[#allocation2 + $0xc8] sm:$0xff]
        %v2210 = vld [vmem:[#allocation2 + $0xd0] sm:$0xff]
        %v2211 = vld [vmem:[#allocation2 + $0xd8] sm:$0xff]
        %v2212 = vld [vmem:[#allocation2 + $0xe0] sm:$0xff]
        %v2213 = vld [vmem:[#allocation2 + $0xe8] sm:$0xff]
        %v2214 = vld [vmem:[#allocation2 + $0xf0] sm:$0xff]
        %v2215 = vld [vmem:[#allocation2 + $0xf8] sm:$0xff]
        %v2216 = vld [vmem:[#allocation2 + $0x100] sm:$0xff]
        %v2217 = vld [vmem:[#allocation2 + $0x108] sm:$0xff]
        %v2218 = vld [vmem:[#allocation2 + $0x110] sm:$0xff]
        %v2219 = vunpack.c.l.bf16 %v2203
        %v2220 = vunpack.c.l.bf16 %v2204
        %v2221 = vunpack.c.l.bf16 %v2205
        %v2222 = vunpack.c.l.bf16 %v2206
        %v2223 = vunpack.c.l.bf16 %v2207
        %v2224 = vunpack.c.l.bf16 %v2208
        %v2225 = vunpack.c.l.bf16 %v2209
        %v2226 = vunpack.c.l.bf16 %v2210
        %v2227 = vunpack.c.l.bf16 %v2211
        %v2228 = vunpack.c.l.bf16 %v2212
        %v2229 = vunpack.c.l.bf16 %v2213
        %v2230 = vunpack.c.l.bf16 %v2214
        %v2231 = vunpack.c.l.bf16 %v2215
        %v2232 = vunpack.c.l.bf16 %v2216
        %v2233 = vunpack.c.l.bf16 %v2217
        %v2234 = vunpack.c.l.bf16 %v2218
        %v2235 = vunpack.c.h.bf16 %v2203
        %v2236 = vunpack.c.h.bf16 %v2204
        %v2237 = vunpack.c.h.bf16 %v2205
        %v2238 = vunpack.c.h.bf16 %v2206
        %v2239 = vunpack.c.h.bf16 %v2207
        %v2240 = vunpack.c.h.bf16 %v2208
        %v2241 = vunpack.c.h.bf16 %v2209
        %v2242 = vunpack.c.h.bf16 %v2210
        %v2243 = vunpack.c.h.bf16 %v2211
        %v2244 = vunpack.c.h.bf16 %v2212
        %v2245 = vunpack.c.h.bf16 %v2213
        %v2246 = vunpack.c.h.bf16 %v2214
        %v2247 = vunpack.c.h.bf16 %v2215
        %v2248 = vunpack.c.h.bf16 %v2216
        %v2249 = vunpack.c.h.bf16 %v2217
        %v2250 = vunpack.c.h.bf16 %v2218
        %v2251 = vadd.f32 %v2171, %v2219
        %v2252 = vadd.f32 %v2172, %v2220
        %v2253 = vadd.f32 %v2173, %v2221
        %v2254 = vadd.f32 %v2174, %v2222
        %v2255 = vadd.f32 %v2175, %v2223
        %v2256 = vadd.f32 %v2176, %v2224
        %v2257 = vadd.f32 %v2177, %v2225
        %v2258 = vadd.f32 %v2178, %v2226
        %v2259 = vadd.f32 %v2179, %v2227
        %v2260 = vadd.f32 %v2180, %v2228
        %v2261 = vadd.f32 %v2181, %v2229
        %v2262 = vadd.f32 %v2182, %v2230
        %v2263 = vadd.f32 %v2183, %v2231
        %v2264 = vadd.f32 %v2184, %v2232
        %v2265 = vadd.f32 %v2185, %v2233
        %v2266 = vadd.f32 %v2186, %v2234
        %v2267 = vadd.f32 %v2187, %v2235
        %v2268 = vadd.f32 %v2188, %v2236
        %v2269 = vadd.f32 %v2189, %v2237
        %v2270 = vadd.f32 %v2190, %v2238
        %v2271 = vadd.f32 %v2191, %v2239
        %v2272 = vadd.f32 %v2192, %v2240
        %v2273 = vadd.f32 %v2193, %v2241
        %v2274 = vadd.f32 %v2194, %v2242
        %v2275 = vadd.f32 %v2195, %v2243
        %v2276 = vadd.f32 %v2196, %v2244
        %v2277 = vadd.f32 %v2197, %v2245
        %v2278 = vadd.f32 %v2198, %v2246
        %v2279 = vadd.f32 %v2199, %v2247
        %v2280 = vadd.f32 %v2200, %v2248
        %v2281 = vadd.f32 %v2201, %v2249
        %v2282 = vadd.f32 %v2202, %v2250
        %2283 = vst [vmem:[%s176] sm:$0xff] %v2251
        %2284 = vst [vmem:[%s176 + $0x8] sm:$0xff] %v2252
        %2285 = vst [vmem:[%s176 + $0x10] sm:$0xff] %v2253
        %2286 = vst [vmem:[%s176 + $0x18] sm:$0xff] %v2254
        %2287 = vst [vmem:[%s176 + $0x20] sm:$0xff] %v2255
        %2288 = vst [vmem:[%s176 + $0x28] sm:$0xff] %v2256
        %2289 = vst [vmem:[%s176 + $0x30] sm:$0xff] %v2257
        %2290 = vst [vmem:[%s176 + $0x38] sm:$0xff] %v2258
        %2291 = vst [vmem:[%s176 + $0x40] sm:$0xff] %v2259
        %2292 = vst [vmem:[%s176 + $0x48] sm:$0xff] %v2260
        %2293 = vst [vmem:[%s176 + $0x50] sm:$0xff] %v2261
        %2294 = vst [vmem:[%s176 + $0x58] sm:$0xff] %v2262
        %2295 = vst [vmem:[%s176 + $0x60] sm:$0xff] %v2263
        %2296 = vst [vmem:[%s176 + $0x68] sm:$0xff] %v2264
        %2297 = vst [vmem:[%s176 + $0x70] sm:$0xff] %v2265
        %2298 = vst [vmem:[%s176 + $0x78] sm:$0xff] %v2266
        %2299 = vst [vmem:[%s176 + $0x80] sm:$0xff] %v2267
        %2300 = vst [vmem:[%s176 + $0x88] sm:$0xff] %v2268
        %2301 = vst [vmem:[%s176 + $0x90] sm:$0xff] %v2269
        %2302 = vst [vmem:[%s176 + $0x98] sm:$0xff] %v2270
        %2303 = vst [vmem:[%s176 + $0xa0] sm:$0xff] %v2271
        %2304 = vst [vmem:[%s176 + $0xa8] sm:$0xff] %v2272
        %2305 = vst [vmem:[%s176 + $0xb0] sm:$0xff] %v2273
        %2306 = vst [vmem:[%s176 + $0xb8] sm:$0xff] %v2274
        %2307 = vst [vmem:[%s176 + $0xc0] sm:$0xff] %v2275
        %2308 = vst [vmem:[%s176 + $0xc8] sm:$0xff] %v2276
        %2309 = vst [vmem:[%s176 + $0xd0] sm:$0xff] %v2277
        %2310 = vst [vmem:[%s176 + $0xd8] sm:$0xff] %v2278
        %2311 = vst [vmem:[%s176 + $0xe0] sm:$0xff] %v2279
        %2312 = vst [vmem:[%s176 + $0xe8] sm:$0xff] %v2280
        %2313 = vst [vmem:[%s176 + $0xf0] sm:$0xff] %v2281
        %2314 = vst [vmem:[%s176 + $0xf8] sm:$0xff] %v2282
        %s2315 = sand.u32 %s75, 1
        %s2316 = scalar_lea.sflag [#allocation5], %s2315
        %s2317 = sand.u32 %s75, 1
        %s2318 = smul.addr %s2317, 256
        %s2319 = scalar_lea.vmem [#allocation8], %s2318
        // Predicated region
        $region37: #{tpu_custom_call.1} parent=27 // pred_check
          %p2320 = pneg %p85
        $region38: #{tpu_custom_call.1} parent=27 // pred_check_branch
          %2322 = sbr.rel (%p2320) target = $region40
        $region39: #{tpu_custom_call.1} parent=27 // pred_region
          %s2324 = ssub.s32 4096, 4096
          %2325 = vsyncadd %s2316, %s2324
          %s2326 = smul.addr %s20, 32
          %s2327 = smul.addr %s2326, 128
          %s2328 = scalar_lea.hbm %s2, %s2327
          %s2329 = sshll.u32 %s2319, 4
          %s2330 = int_to_ptr.vmem [resolvable:$true] %s2329
          %2335 = dma.vmem_to_hbm [thread:$0]  %s2330, 4096, %s2328, %s2316, 2048, 2048, 128
        $region40: #{tpu_custom_call.1} parent=27 // pred_fallthru
          _
      $region28: #{tpu_custom_call.1} parent=5 // pred_fallthru
        _
      %p2336 = scmp.le.s32.totalorder 2, %s15
      // Predicated region
      $region41: #{tpu_custom_call.1} parent=5 // pred_check
        %p2337 = pneg %p2336
      $region42: #{tpu_custom_call.1} parent=5 // pred_check_branch
        %2339 = sbr.rel (%p2337) target = $region44
      $region43: #{tpu_custom_call.1} parent=5 // pred_region
        %s2340 = ssub.s32 %s15, 2
        // Predicated region
        $region45: #{tpu_custom_call.1} parent=43 // pred_check
          %p2341 = pneg %p91
        $region46: #{tpu_custom_call.1} parent=43 // pred_check_branch
          %2343 = sbr.rel (%p2341) target = $region48
        $region47: #{tpu_custom_call.1} parent=43 // pred_region
          %s2344 = sand.u32 %s76, 1
          %s2345 = scalar_lea.sflag [#allocation5], %s2344
          %s2346 = sand.u32 %s76, 1
          %s2347 = smul.addr %s2346, 256
          %s2348 = scalar_lea.vmem [#allocation8], %s2347
          %2349 = dma.done %s2345, 4096
        $region48: #{tpu_custom_call.1} parent=43 // pred_fallthru
          _
      $region44: #{tpu_custom_call.1} parent=5 // pred_fallthru
        _
    $region6: #{tpu_custom_call.1} parent=1 // loop_footer
      %s19 = sadd.s32 1, %s15
    $region7: #{tpu_custom_call.1} parent=1 // loop_footer_branch
      %14 = sbr.rel target = $region3
    $region8: #{tpu_custom_call.1} parent=1 // loop_exit
      _
    %2350 = vsyncpa [#allocation4], 1
    %s2351 = scalar_lea.sflag [#allocation4], 1
    %2352 = vsyncpa %s2351, 1
    %2353 = vsyncpa [#allocation7], 1
    %2354 = vsyncpa [#allocation5], 1
    %s2355 = scalar_lea.sflag [#allocation5], 1
    %2356 = vsyncpa %s2355, 1

</llo_original>
